<compile_context>
chip_gen: v5e
topology: v5e:2x2
jax: 0.10.0
libtpu: 0.0.40
codegen_flags: <defaults>
</compile_context>

<pallas_src>
import jax
import jax.numpy as jnp
from jax.experimental import pallas as pl
from jax.experimental.pallas import tpu as pltpu

NUM_LAYERS = 2
SEQ_LEN = 2      # stack([embed_1, embed_2], dim=1)
OUT_W = 128      # lane-dense output slab width


def _lstm_ddi_kernel(e1_ref, e2_ref,
                     w_ref, b_ref,
                     fc1w_ref, fc1b_ref, fc2w_ref, fc2b_ref,
                     out_ref):
    """2-step, 2-layer LSTM + MLP head on one batch tile, fully resident in VMEM.

    w_ref: (L, E+H, 4H)  packed [W_ih; W_hh], gate order [i, f, g, o]
    b_ref: (L, 1, 4H)    pre-summed b_ih + b_hh
    out_ref: (bb, 128) slab; [:, :H] = h_n[-1], [:, H:2H] = pred (lane-broadcast)
    """
    H = fc1w_ref.shape[0]
    E = e1_ref.shape[-1]
    bb = e1_ref.shape[0]

    e1 = e1_ref[...].astype(jnp.float32)
    e2 = e2_ref[...].astype(jnp.float32)

    w0 = w_ref[0]                                   # (E+H, 4H)
    w1 = w_ref[1]                                   # (H+H, 4H)  (E == H)
    # Hoisted bias broadcasts (JAX does not CSE broadcast_in_dim).
    b0 = jnp.broadcast_to(b_ref[0], (bb, 4 * H))
    b1 = jnp.broadcast_to(b_ref[1], (bb, 4 * H))

    def gate_act(gates):
        # One full-width (bb, 4H) sigmoid + one tanh; slice activated results.
        sig = jax.nn.sigmoid(gates)
        th = jnp.tanh(gates)
        return (sig[:, 0 * H:1 * H],    # i
                sig[:, 1 * H:2 * H],    # f
                th[:, 2 * H:3 * H],     # g
                sig[:, 3 * H:4 * H])    # o

    # Layer-0 input path for BOTH timesteps fused into one MXU pass
    # (sublane-axis stack; layout-free for bb % 8 == 0).
    x01 = jnp.concatenate([e1, e2], axis=0)                        # (2*bb, E)
    gin0 = jnp.dot(x01, w0[:E, :], preferred_element_type=jnp.float32)

    # ---- t = 0 (h = c = 0: hidden-path matmul and f*c term are exactly zero) ----
    i_g, _, g_g, o_g = gate_act(gin0[:bb] + b0)
    c0 = i_g * g_g
    h0 = o_g * jnp.tanh(c0)

    i_g, _, g_g, o_g = gate_act(
        jnp.dot(h0, w1[:H, :], preferred_element_type=jnp.float32) + b1)
    c1 = i_g * g_g
    h1 = o_g * jnp.tanh(c1)

    # ---- t = 1 ----
    i_g, f_g, g_g, o_g = gate_act(
        gin0[bb:]
        + jnp.dot(h0, w0[E:, :], preferred_element_type=jnp.float32)
        + b0)
    c0 = f_g * c0 + i_g * g_g
    h0 = o_g * jnp.tanh(c0)

    i_g, f_g, g_g, o_g = gate_act(
        jnp.dot(h0, w1[:H, :], preferred_element_type=jnp.float32)
        + jnp.dot(h1, w1[H:, :], preferred_element_type=jnp.float32)
        + b1)
    c1 = f_g * c1 + i_g * g_g
    h1 = o_g * jnp.tanh(c1)

    lstm_output = h1                                               # h_n[-1]  (bb, H)

    # fc head: Linear(H,H) -> ReLU -> Linear(H,1) -> Sigmoid
    hid = jnp.dot(lstm_output, fc1w_ref[...],
                  preferred_element_type=jnp.float32) + fc1b_ref[...]
    hid = jnp.maximum(hid, 0.0)
    # fc2 (K=H, N=1) as VPU multiply + lane reduction (fc2_w is a (1, H) row vector).
    logit = jnp.sum(hid * fc2w_ref[...], axis=-1, keepdims=True) + fc2b_ref[...]
    pred = jax.nn.sigmoid(logit)                                   # (bb, 1)

    # Lane-dense 128-wide writeback; no lane-axis concat.  Full-width zero store defines
    # the pad lanes, then two 32-lane-aligned sub-stores place h_n[-1] and pred.
    out_ref[...] = jnp.zeros((bb, OUT_W), jnp.float32)
    out_ref[:, 0:H] = lstm_output
    out_ref[:, H:2 * H] = jnp.broadcast_to(pred, (bb, H))


def _default_block_b(B):
    """bb = B (grid=1) on single-TC v5e/v6e; bb = B/2 (parallel 2-step grid) on dual-TC v7x."""
    try:
        kind = jax.devices()[0].device_kind.lower()
    except Exception:
        kind = ""
    if "v7" in kind and B % 2 == 0 and (B // 2) % 8 == 0:
        return B // 2
    return B


def lstm_ddi_forward(molecule1, molecule2, params, return_embed=False, block_b=None):
    """Wrapper mirroring LSTM_DDI.forward (gnn = identity)."""
    # TODO(synk): gnn is an external module of unknown architecture; modeled as identity.
    embed_1 = molecule1
    embed_2 = molecule2

    B, E = embed_1.shape
    H = params["fc1_w"].shape[0]
    L = NUM_LAYERS
    assert E == H, "packed [W_ih; W_hh] weight layout assumes embed_dim == hidden_dim"

    bb = block_b if block_b is not None else _default_block_b(B)
    bb = min(bb, B)
    assert B % bb == 0 and (bb % 8 == 0 or bb == B), \
        "batch tile must divide B and be a multiple of 8 (or equal B)"

    out = pl.pallas_call(
        _lstm_ddi_kernel,
        out_shape=jax.ShapeDtypeStruct((B, OUT_W), jnp.float32),
        grid_spec=pltpu.PrefetchScalarGridSpec(
            num_scalar_prefetch=0,
            grid=(B // bb,),
            in_specs=[
                pl.BlockSpec((bb, E), lambda i: (i, 0)),               # embed_1 tile
                pl.BlockSpec((bb, E), lambda i: (i, 0)),               # embed_2 tile
                pl.BlockSpec((L, E + H, 4 * H), lambda i: (0, 0, 0)),  # packed LSTM weights
                pl.BlockSpec((L, 1, 4 * H), lambda i: (0, 0, 0)),      # pre-summed biases
                pl.BlockSpec((H, H), lambda i: (0, 0)),                # fc1 weight
                pl.BlockSpec((1, H), lambda i: (0, 0)),                # fc1 bias
                pl.BlockSpec((1, H), lambda i: (0, 0)),                # fc2 weight (row vector)
                pl.BlockSpec((1, 1), lambda i: (0, 0)),                # fc2 bias
            ],
            out_specs=pl.BlockSpec((bb, OUT_W), lambda i: (i, 0)),
        ),
        compiler_params=pltpu.CompilerParams(
            dimension_semantics=("parallel",)),
    )(embed_1, embed_2,
      params["w_cat"], params["b_cat"],
      params["fc1_w"], params["fc1_b"], params["fc2_w"], params["fc2_b"])

    lstm_output = out[:, :H]
    pred = out[:, H:H + 1]

    if return_embed:
        return lstm_output
    return pred, embed_1, embed_2


def init_params(key, embed_dim, hidden_dim):
    """Deterministic synthetic parameters (PyTorch-style uniform(-1/sqrt(H), 1/sqrt(H)))."""
    assert embed_dim == hidden_dim, "stacked layers + packed weights assume E == H"
    H = hidden_dim
    k = 1.0 / jnp.sqrt(jnp.float32(H))
    keys = jax.random.split(key, 8)

    def u(k_, shape):
        return jax.random.uniform(k_, shape, jnp.float32, -k, k)

    # LSTM weights per layer, pre-transposed to (in, out) and packed [W_ih; W_hh] along K.
    # Gate order along 4H is PyTorch's [i, f, g, o].
    w_cat = u(keys[0], (NUM_LAYERS, embed_dim + H, 4 * H))
    b_ih = u(keys[1], (NUM_LAYERS, 1, 4 * H))
    b_hh = u(keys[2], (NUM_LAYERS, 1, 4 * H))
    b_cat = b_ih + b_hh           # exact for LSTM (no GRU-style r-gate coupling)
    # FC head.
    fc1_w = u(keys[3], (H, H))
    fc1_b = u(keys[4], (1, H))
    fc2_w = u(keys[5], (1, H))    # row-vector layout for VPU multiply + lane reduce
    fc2_b = u(keys[6], (1, 1))
    return dict(w_cat=w_cat, b_cat=b_cat,
                fc1_w=fc1_w, fc1_b=fc1_b, fc2_w=fc2_w, fc2_b=fc2_b)


def _reference_forward(molecule1, molecule2, p):
    """Pure-JAX LSTM reference for numerical checking."""
    H = p["fc1_w"].shape[0]
    E = molecule1.shape[1]
    B = molecule1.shape[0]
    seq = (molecule1, molecule2)
    h = [jnp.zeros((B, H), jnp.float32) for _ in range(NUM_LAYERS)]
    c = [jnp.zeros((B, H), jnp.float32) for _ in range(NUM_LAYERS)]
    for t in range(SEQ_LEN):
        x = seq[t]
        for l in range(NUM_LAYERS):
            w_ih = p["w_cat"][l, :E, :]
            w_hh = p["w_cat"][l, E:, :]
            gates = x @ w_ih + h[l] @ w_hh + p["b_cat"][l]
            i_g = jax.nn.sigmoid(gates[:, 0:H])
            f_g = jax.nn.sigmoid(gates[:, H:2 * H])
            g_g = jnp.tanh(gates[:, 2 * H:3 * H])
            o_g = jax.nn.sigmoid(gates[:, 3 * H:4 * H])
            c[l] = f_g * c[l] + i_g * g_g
            h[l] = o_g * jnp.tanh(c[l])
            x = h[l]
    hid = jnp.maximum(h[-1] @ p["fc1_w"] + p["fc1_b"], 0.0)
    logit = hid @ p["fc2_w"].T + p["fc2_b"]
    return jax.nn.sigmoid(logit), h[-1]


if __name__ == "__main__":
    # Small-but-tile-friendly shapes: 64 DDI pairs, E = H = 32, 2 LSTM layers.
    B, E, H = 64, 32, 32

    key = jax.random.PRNGKey(0)
    k_m1, k_m2, k_p = jax.random.split(key, 3)
    molecule1 = jax.random.normal(k_m1, (B, E), jnp.float32)   # pre-gnn embedding stand-in
    molecule2 = jax.random.normal(k_m2, (B, E), jnp.float32)
    params = init_params(k_p, E, H)

    pred, emb1, emb2 = lstm_ddi_forward(molecule1, molecule2, params)
    jax.block_until_ready((pred, emb1, emb2))

    ref_pred, ref_h = _reference_forward(molecule1, molecule2, params)
    assert pred.shape == (B, 1)
    assert jnp.allclose(pred, ref_pred, atol=1e-5), "pred mismatch vs JAX reference"
    assert jnp.allclose(emb1, molecule1) and jnp.allclose(emb2, molecule2)

    h_out = lstm_ddi_forward(molecule1, molecule2, params, return_embed=True)
    jax.block_until_ready(h_out)
    assert jnp.allclose(h_out, ref_h, atol=1e-5), "h_n[-1] mismatch vs JAX reference"

    print("KERNEL_OK")
</pallas_src>

<mosaic_0001>
module attributes {stable_mosaic.version = 11 : i64} {
  func.func @_lstm_ddi_kernel(%arg0: i32, %arg1: memref<64x32xf32, #tpu.memory_space<vmem>>, %arg2: memref<64x32xf32, #tpu.memory_space<vmem>>, %arg3: memref<2x64x128xf32, #tpu.memory_space<vmem>>, %arg4: memref<2x1x128xf32, #tpu.memory_space<vmem>>, %arg5: memref<32x32xf32, #tpu.memory_space<vmem>>, %arg6: memref<1x32xf32, #tpu.memory_space<vmem>>, %arg7: memref<1x32xf32, #tpu.memory_space<vmem>>, %arg8: memref<1x1xf32, #tpu.memory_space<vmem>>, %arg9: memref<64x128xf32, #tpu.memory_space<vmem>>) attributes {dimension_semantics = [#tpu.dimension_semantics<parallel>], iteration_bounds = array<i64: 1>, scalar_prefetch = 0 : i64, scratch_operands = 0 : i64, tpu.core_type = #tpu.core_type<tc>, window_params = [{transform_indices = @transform_0, window_bounds = array<i64: 64, 32>}, {transform_indices = @transform_1, window_bounds = array<i64: 64, 32>}, {pipeline_mode = #tpu.pipeline_mode<synchronous>, transform_indices = @transform_2, window_bounds = array<i64: 2, 64, 128>}, {pipeline_mode = #tpu.pipeline_mode<synchronous>, transform_indices = @transform_3, window_bounds = array<i64: 2, 1, 128>}, {pipeline_mode = #tpu.pipeline_mode<synchronous>, transform_indices = @transform_4, window_bounds = array<i64: 32, 32>}, {pipeline_mode = #tpu.pipeline_mode<synchronous>, transform_indices = @transform_5, window_bounds = array<i64: 1, 32>}, {pipeline_mode = #tpu.pipeline_mode<synchronous>, transform_indices = @transform_6, window_bounds = array<i64: 1, 32>}, {pipeline_mode = #tpu.pipeline_mode<synchronous>, transform_indices = @transform_7, window_bounds = array<i64: 1, 1>}, {transform_indices = @transform_8, window_bounds = array<i64: 64, 128>}]} {
    %c0 = arith.constant 0 : index
    %c0_0 = arith.constant 0 : index
    %0 = vector.load %arg1[%c0, %c0_0] : memref<64x32xf32, #tpu.memory_space<vmem>>, vector<64x32xf32>
    %c0_1 = arith.constant 0 : index
    %c0_2 = arith.constant 0 : index
    %1 = vector.load %arg2[%c0_1, %c0_2] : memref<64x32xf32, #tpu.memory_space<vmem>>, vector<64x32xf32>
    %c0_3 = arith.constant 0 : index
    %c0_4 = arith.constant 0 : index
    %c0_5 = arith.constant 0 : index
    %2 = vector.load %arg3[%c0_3, %c0_4, %c0_5] : memref<2x64x128xf32, #tpu.memory_space<vmem>>, vector<1x64x128xf32>
    %3 = vector.shape_cast %2 : vector<1x64x128xf32> to vector<64x128xf32>
    %c1 = arith.constant 1 : index
    %c0_6 = arith.constant 0 : index
    %c0_7 = arith.constant 0 : index
    %4 = vector.load %arg3[%c1, %c0_6, %c0_7] : memref<2x64x128xf32, #tpu.memory_space<vmem>>, vector<1x64x128xf32>
    %5 = vector.shape_cast %4 : vector<1x64x128xf32> to vector<64x128xf32>
    %c0_8 = arith.constant 0 : index
    %c0_9 = arith.constant 0 : index
    %c0_10 = arith.constant 0 : index
    %6 = vector.load %arg4[%c0_8, %c0_9, %c0_10] : memref<2x1x128xf32, #tpu.memory_space<vmem>>, vector<1x1x128xf32>
    %7 = vector.shape_cast %6 : vector<1x1x128xf32> to vector<1x128xf32>
    %8 = vector.shape_cast %7 : vector<1x128xf32> to vector<1x128xf32>
    %9 = vector.broadcast %8 : vector<1x128xf32> to vector<64x128xf32>
    %c1_11 = arith.constant 1 : index
    %c0_12 = arith.constant 0 : index
    %c0_13 = arith.constant 0 : index
    %10 = vector.load %arg4[%c1_11, %c0_12, %c0_13] : memref<2x1x128xf32, #tpu.memory_space<vmem>>, vector<1x1x128xf32>
    %11 = vector.shape_cast %10 : vector<1x1x128xf32> to vector<1x128xf32>
    %12 = vector.shape_cast %11 : vector<1x128xf32> to vector<1x128xf32>
    %13 = vector.broadcast %12 : vector<1x128xf32> to vector<64x128xf32>
    %14 = tpu.concatenate %0, %1 in 0 : vector<64x32xf32>, vector<64x32xf32> -> vector<128x32xf32>
    %15 = vector.extract_strided_slice %3 {offsets = [0, 0], sizes = [32, 128], strides = [1, 1]} : vector<64x128xf32> to vector<32x128xf32>
    %cst = arith.constant dense<0.000000e+00> : vector<128x128xf32>
    %16 = tpu.matmul %14, %15, %cst {dimension_numbers = #tpu.dot_dimension_numbers<[1], [0], [0], [1], [0, 0, 1, 1], [], []>} : vector<128x32xf32>, vector<32x128xf32>, vector<128x128xf32> -> vector<128x128xf32>
    %17 = vector.extract_strided_slice %16 {offsets = [0, 0], sizes = [64, 128], strides = [1, 1]} : vector<128x128xf32> to vector<64x128xf32>
    %18 = arith.addf %17, %9 : vector<64x128xf32>
    %19 = arith.negf %18 : vector<64x128xf32>
    %20 = math.exp %19 : vector<64x128xf32>
    %cst_14 = arith.constant 1.000000e+00 : f32
    %21 = vector.broadcast %cst_14 : f32 to vector<64x128xf32>
    %22 = arith.addf %21, %20 : vector<64x128xf32>
    %23 = arith.divf %21, %22 : vector<64x128xf32>
    %24 = math.tanh %18 : vector<64x128xf32>
    %25 = vector.extract_strided_slice %23 {offsets = [0, 0], sizes = [64, 32], strides = [1, 1]} : vector<64x128xf32> to vector<64x32xf32>
    %26 = vector.extract_strided_slice %24 {offsets = [0, 64], sizes = [64, 32], strides = [1, 1]} : vector<64x128xf32> to vector<64x32xf32>
    %27 = vector.extract_strided_slice %23 {offsets = [0, 96], sizes = [64, 32], strides = [1, 1]} : vector<64x128xf32> to vector<64x32xf32>
    %28 = arith.mulf %25, %26 : vector<64x32xf32>
    %29 = math.tanh %28 : vector<64x32xf32>
    %30 = arith.mulf %27, %29 : vector<64x32xf32>
    %31 = vector.extract_strided_slice %5 {offsets = [0, 0], sizes = [32, 128], strides = [1, 1]} : vector<64x128xf32> to vector<32x128xf32>
    %cst_15 = arith.constant dense<0.000000e+00> : vector<64x128xf32>
    %32 = tpu.matmul %30, %31, %cst_15 {dimension_numbers = #tpu.dot_dimension_numbers<[1], [0], [0], [1], [0, 0, 1, 1], [], []>} : vector<64x32xf32>, vector<32x128xf32>, vector<64x128xf32> -> vector<64x128xf32>
    %33 = arith.addf %32, %13 : vector<64x128xf32>
    %34 = arith.negf %33 : vector<64x128xf32>
    %35 = math.exp %34 : vector<64x128xf32>
    %cst_16 = arith.constant 1.000000e+00 : f32
    %36 = vector.broadcast %cst_16 : f32 to vector<64x128xf32>
    %37 = arith.addf %36, %35 : vector<64x128xf32>
    %38 = arith.divf %36, %37 : vector<64x128xf32>
    %39 = math.tanh %33 : vector<64x128xf32>
    %40 = vector.extract_strided_slice %38 {offsets = [0, 0], sizes = [64, 32], strides = [1, 1]} : vector<64x128xf32> to vector<64x32xf32>
    %41 = vector.extract_strided_slice %39 {offsets = [0, 64], sizes = [64, 32], strides = [1, 1]} : vector<64x128xf32> to vector<64x32xf32>
    %42 = vector.extract_strided_slice %38 {offsets = [0, 96], sizes = [64, 32], strides = [1, 1]} : vector<64x128xf32> to vector<64x32xf32>
    %43 = arith.mulf %40, %41 : vector<64x32xf32>
    %44 = math.tanh %43 : vector<64x32xf32>
    %45 = arith.mulf %42, %44 : vector<64x32xf32>
    %46 = vector.extract_strided_slice %16 {offsets = [64, 0], sizes = [64, 128], strides = [1, 1]} : vector<128x128xf32> to vector<64x128xf32>
    %47 = vector.extract_strided_slice %3 {offsets = [32, 0], sizes = [32, 128], strides = [1, 1]} : vector<64x128xf32> to vector<32x128xf32>
    %cst_17 = arith.constant dense<0.000000e+00> : vector<64x128xf32>
    %48 = tpu.matmul %30, %47, %cst_17 {dimension_numbers = #tpu.dot_dimension_numbers<[1], [0], [0], [1], [0, 0, 1, 1], [], []>} : vector<64x32xf32>, vector<32x128xf32>, vector<64x128xf32> -> vector<64x128xf32>
    %49 = arith.addf %46, %48 : vector<64x128xf32>
    %50 = arith.addf %49, %9 : vector<64x128xf32>
    %51 = arith.negf %50 : vector<64x128xf32>
    %52 = math.exp %51 : vector<64x128xf32>
    %cst_18 = arith.constant 1.000000e+00 : f32
    %53 = vector.broadcast %cst_18 : f32 to vector<64x128xf32>
    %54 = arith.addf %53, %52 : vector<64x128xf32>
    %55 = arith.divf %53, %54 : vector<64x128xf32>
    %56 = math.tanh %50 : vector<64x128xf32>
    %57 = vector.extract_strided_slice %55 {offsets = [0, 0], sizes = [64, 32], strides = [1, 1]} : vector<64x128xf32> to vector<64x32xf32>
    %58 = vector.extract_strided_slice %55 {offsets = [0, 32], sizes = [64, 32], strides = [1, 1]} : vector<64x128xf32> to vector<64x32xf32>
    %59 = vector.extract_strided_slice %56 {offsets = [0, 64], sizes = [64, 32], strides = [1, 1]} : vector<64x128xf32> to vector<64x32xf32>
    %60 = vector.extract_strided_slice %55 {offsets = [0, 96], sizes = [64, 32], strides = [1, 1]} : vector<64x128xf32> to vector<64x32xf32>
    %61 = arith.mulf %58, %28 : vector<64x32xf32>
    %62 = arith.mulf %57, %59 : vector<64x32xf32>
    %63 = arith.addf %61, %62 : vector<64x32xf32>
    %64 = math.tanh %63 : vector<64x32xf32>
    %65 = arith.mulf %60, %64 : vector<64x32xf32>
    %66 = vector.extract_strided_slice %5 {offsets = [0, 0], sizes = [32, 128], strides = [1, 1]} : vector<64x128xf32> to vector<32x128xf32>
    %cst_19 = arith.constant dense<0.000000e+00> : vector<64x128xf32>
    %67 = tpu.matmul %65, %66, %cst_19 {dimension_numbers = #tpu.dot_dimension_numbers<[1], [0], [0], [1], [0, 0, 1, 1], [], []>} : vector<64x32xf32>, vector<32x128xf32>, vector<64x128xf32> -> vector<64x128xf32>
    %68 = vector.extract_strided_slice %5 {offsets = [32, 0], sizes = [32, 128], strides = [1, 1]} : vector<64x128xf32> to vector<32x128xf32>
    %cst_20 = arith.constant dense<0.000000e+00> : vector<64x128xf32>
    %69 = tpu.matmul %45, %68, %cst_20 {dimension_numbers = #tpu.dot_dimension_numbers<[1], [0], [0], [1], [0, 0, 1, 1], [], []>} : vector<64x32xf32>, vector<32x128xf32>, vector<64x128xf32> -> vector<64x128xf32>
    %70 = arith.addf %67, %69 : vector<64x128xf32>
    %71 = arith.addf %70, %13 : vector<64x128xf32>
    %72 = arith.negf %71 : vector<64x128xf32>
    %73 = math.exp %72 : vector<64x128xf32>
    %cst_21 = arith.constant 1.000000e+00 : f32
    %74 = vector.broadcast %cst_21 : f32 to vector<64x128xf32>
    %75 = arith.addf %74, %73 : vector<64x128xf32>
    %76 = arith.divf %74, %75 : vector<64x128xf32>
    %77 = math.tanh %71 : vector<64x128xf32>
    %78 = vector.extract_strided_slice %76 {offsets = [0, 0], sizes = [64, 32], strides = [1, 1]} : vector<64x128xf32> to vector<64x32xf32>
    %79 = vector.extract_strided_slice %76 {offsets = [0, 32], sizes = [64, 32], strides = [1, 1]} : vector<64x128xf32> to vector<64x32xf32>
    %80 = vector.extract_strided_slice %77 {offsets = [0, 64], sizes = [64, 32], strides = [1, 1]} : vector<64x128xf32> to vector<64x32xf32>
    %81 = vector.extract_strided_slice %76 {offsets = [0, 96], sizes = [64, 32], strides = [1, 1]} : vector<64x128xf32> to vector<64x32xf32>
    %82 = arith.mulf %79, %43 : vector<64x32xf32>
    %83 = arith.mulf %78, %80 : vector<64x32xf32>
    %84 = arith.addf %82, %83 : vector<64x32xf32>
    %85 = math.tanh %84 : vector<64x32xf32>
    %86 = arith.mulf %81, %85 : vector<64x32xf32>
    %c0_22 = arith.constant 0 : index
    %c0_23 = arith.constant 0 : index
    %87 = vector.load %arg5[%c0_22, %c0_23] : memref<32x32xf32, #tpu.memory_space<vmem>>, vector<32x32xf32>
    %cst_24 = arith.constant dense<0.000000e+00> : vector<64x32xf32>
    %88 = tpu.matmul %86, %87, %cst_24 {dimension_numbers = #tpu.dot_dimension_numbers<[1], [0], [0], [1], [0, 0, 1, 1], [], []>} : vector<64x32xf32>, vector<32x32xf32>, vector<64x32xf32> -> vector<64x32xf32>
    %c0_25 = arith.constant 0 : index
    %c0_26 = arith.constant 0 : index
    %89 = vector.load %arg6[%c0_25, %c0_26] : memref<1x32xf32, #tpu.memory_space<vmem>>, vector<1x32xf32>
    %90 = vector.broadcast %89 : vector<1x32xf32> to vector<64x32xf32>
    %91 = arith.addf %88, %90 : vector<64x32xf32>
    %cst_27 = arith.constant 0.000000e+00 : f32
    %92 = vector.broadcast %cst_27 : f32 to vector<64x32xf32>
    %93 = arith.maximumf %91, %92 : vector<64x32xf32>
    %c0_28 = arith.constant 0 : index
    %c0_29 = arith.constant 0 : index
    %94 = vector.load %arg7[%c0_28, %c0_29] : memref<1x32xf32, #tpu.memory_space<vmem>>, vector<1x32xf32>
    %95 = vector.broadcast %94 : vector<1x32xf32> to vector<64x32xf32>
    %96 = arith.mulf %93, %95 : vector<64x32xf32>
    %cst_30 = arith.constant dense<0.000000e+00> : vector<64xf32>
    %97 = vector.multi_reduction <add>, %96, %cst_30 [1] : vector<64x32xf32> to vector<64xf32>
    %98 = vector.shape_cast %97 : vector<64xf32> to vector<64x1xf32>
    %c0_31 = arith.constant 0 : index
    %c0_32 = arith.constant 0 : index
    %99 = vector.load %arg8[%c0_31, %c0_32] : memref<1x1xf32, #tpu.memory_space<vmem>>, vector<1x1xf32>
    %100 = vector.broadcast %99 : vector<1x1xf32> to vector<64x1xf32>
    %101 = arith.addf %98, %100 : vector<64x1xf32>
    %102 = arith.negf %101 : vector<64x1xf32>
    %103 = math.exp %102 : vector<64x1xf32>
    %cst_33 = arith.constant 1.000000e+00 : f32
    %104 = vector.broadcast %cst_33 : f32 to vector<64x1xf32>
    %105 = arith.addf %104, %103 : vector<64x1xf32>
    %106 = arith.divf %104, %105 : vector<64x1xf32>
    %cst_34 = arith.constant 0.000000e+00 : f32
    %107 = vector.broadcast %cst_34 : f32 to vector<64x128xf32>
    %c0_35 = arith.constant 0 : index
    %c0_36 = arith.constant 0 : index
    %108 = vector.load %arg9[%c0_35, %c0_36] : memref<64x128xf32, #tpu.memory_space<vmem>>, vector<64x128xf32>
    tpu.vector_store %arg9[%c0_35, %c0_36], %107 {strides = array<i32>} : memref<64x128xf32, #tpu.memory_space<vmem>>, vector<64x128xf32>,
    %c0_37 = arith.constant 0 : index
    %c0_38 = arith.constant 0 : index
    %109 = vector.load %arg9[%c0_37, %c0_38] : memref<64x128xf32, #tpu.memory_space<vmem>>, vector<64x32xf32>
    tpu.vector_store %arg9[%c0_37, %c0_38], %86 {strides = array<i32>} : memref<64x128xf32, #tpu.memory_space<vmem>>, vector<64x32xf32>,
    %110 = vector.shape_cast %106 : vector<64x1xf32> to vector<64x1xf32>
    %111 = vector.broadcast %110 : vector<64x1xf32> to vector<64x32xf32>
    %c0_39 = arith.constant 0 : index
    %c32 = arith.constant 32 : index
    %112 = vector.load %arg9[%c0_39, %c32] : memref<64x128xf32, #tpu.memory_space<vmem>>, vector<64x32xf32>
    tpu.vector_store %arg9[%c0_39, %c32], %111 {strides = array<i32>} : memref<64x128xf32, #tpu.memory_space<vmem>>, vector<64x32xf32>,
    return
  }
  func.func @transform_0(%arg0: i32) -> (i32, i32) {
    %c0_i32 = arith.constant 0 : i32
    %c0_i32_0 = arith.constant 0 : i32
    return %arg0, %c0_i32 : i32, i32
  }
  func.func @transform_1(%arg0: i32) -> (i32, i32) {
    %c0_i32 = arith.constant 0 : i32
    %c0_i32_0 = arith.constant 0 : i32
    return %arg0, %c0_i32 : i32, i32
  }
  func.func @transform_2(%arg0: i32) -> (i32, i32, i32) {
    %c0_i32 = arith.constant 0 : i32
    %c0_i32_0 = arith.constant 0 : i32
    %c0_i32_1 = arith.constant 0 : i32
    %c0_i32_2 = arith.constant 0 : i32
    return %c0_i32, %c0_i32_0, %c0_i32_1 : i32, i32, i32
  }
  func.func @transform_3(%arg0: i32) -> (i32, i32, i32) {
    %c0_i32 = arith.constant 0 : i32
    %c0_i32_0 = arith.constant 0 : i32
    %c0_i32_1 = arith.constant 0 : i32
    %c0_i32_2 = arith.constant 0 : i32
    return %c0_i32, %c0_i32_0, %c0_i32_1 : i32, i32, i32
  }
  func.func @transform_4(%arg0: i32) -> (i32, i32) {
    %c0_i32 = arith.constant 0 : i32
    %c0_i32_0 = arith.constant 0 : i32
    %c0_i32_1 = arith.constant 0 : i32
    return %c0_i32, %c0_i32_0 : i32, i32
  }
  func.func @transform_5(%arg0: i32) -> (i32, i32) {
    %c0_i32 = arith.constant 0 : i32
    %c0_i32_0 = arith.constant 0 : i32
    %c0_i32_1 = arith.constant 0 : i32
    return %c0_i32, %c0_i32_0 : i32, i32
  }
  func.func @transform_6(%arg0: i32) -> (i32, i32) {
    %c0_i32 = arith.constant 0 : i32
    %c0_i32_0 = arith.constant 0 : i32
    %c0_i32_1 = arith.constant 0 : i32
    return %c0_i32, %c0_i32_0 : i32, i32
  }
  func.func @transform_7(%arg0: i32) -> (i32, i32) {
    %c0_i32 = arith.constant 0 : i32
    %c0_i32_0 = arith.constant 0 : i32
    %c0_i32_1 = arith.constant 0 : i32
    return %c0_i32, %c0_i32_0 : i32, i32
  }
  func.func @transform_8(%arg0: i32) -> (i32, i32) {
    %c0_i32 = arith.constant 0 : i32
    %c0_i32_0 = arith.constant 0 : i32
    return %arg0, %c0_i32 : i32, i32
  }
}

</mosaic_0001>

<llo_original>
// kernel: tpu_custom_call.1
$region0: #{tpu_custom_call.1}
  #allocation0 [shape = 'u32[]', space=smem, size = 0x4, offset = 0x4, fixed_abs, tag = 'smem constant byte address 0x4 - core index']
  #allocation1 [shape = 'u32[72,128]{1,0:T(1,128)}', space=vmem, size = 0x9000, scoped, tag = 'internal scratch']
  #allocation2 [shape = 'f32[1,1]{1,0:T(1,128)S(1)}', space=vmem, size = 0x200, scoped, tag = 'scoped memory for tpu_custom_call.1']
  %s0 = inlined_call_operand.vmem [shape: f32[64,32], index: 0, kind: input, shape index: {}]
  %s1 = inlined_call_operand.vmem [shape: f32[64,32], index: 1, kind: input, shape index: {}]
  %s2 = inlined_call_operand.vmem [shape: f32[2,64,128], index: 2, kind: input, shape index: {}]
  %s3 = inlined_call_operand.vmem [shape: f32[2,1,128], index: 3, kind: input, shape index: {}]
  %s4 = inlined_call_operand.vmem [shape: f32[32,32], index: 4, kind: input, shape index: {}]
  %s5 = inlined_call_operand.vmem [shape: f32[1,32], index: 5, kind: input, shape index: {}]
  %s6 = inlined_call_operand.vmem [shape: f32[1,32], index: 6, kind: input, shape index: {}]
  %s7 = inlined_call_operand.<no memory space> [shape: f32[1,1], index: 7, kind: input, shape index: {}]
  %s8 = inlined_call_operand.hbm [shape: f32[64,128], index: 8, kind: output, shape index: {}]
  %s9 = sld [smem:[#allocation0]]
  $region42: #{tpu_custom_call.1} parent=0
    _
  %s11 = ssub.s32 1, %s9
  %s12 = scalar_select 0, %s11, %s9
  %v13 = vstv %s7
  %14 = vst [vmem:[#allocation2] sm:$0x1] %v13
  $region1: #{tpu_custom_call.1} parent=0
    #allocation3 [shape = 'u8[32768]{0}', space=vmem, size = 0x8000, scoped, tag = 'output window, operand 0, single buffered']
    #allocation4 [shape = 's32[1]{0}', space=sflag, size = 0x4, scoped, tag = 'scoped memory for tpu_custom_call.1']
    %15 = vsyncpa [#allocation4], 0
    // Predicated region
    $region2: #{tpu_custom_call.1} parent=1 // pred_check
      _
    $region3: #{tpu_custom_call.1} parent=1 // pred_check_branch
      %17 = sbr.rel (0) target = $region5
    $region4: #{tpu_custom_call.1} parent=1 // pred_region
      _
    $region5: #{tpu_custom_call.1} parent=1 // pred_fallthru
      _
    // Predicated region
    $region6: #{tpu_custom_call.1} parent=1 // pred_check
      _
    $region7: #{tpu_custom_call.1} parent=1 // pred_check_branch
      %19 = sbr.rel (0) target = $region9
    $region8: #{tpu_custom_call.1} parent=1 // pred_region
      _
    $region9: #{tpu_custom_call.1} parent=1 // pred_fallthru
      _
    // Predicated region
    $region10: #{tpu_custom_call.1} parent=1 // pred_check
      _
    $region11: #{tpu_custom_call.1} parent=1 // pred_check_branch
      %21 = sbr.rel (0) target = $region13
    $region12: #{tpu_custom_call.1} parent=1 // pred_region
      _
    $region13: #{tpu_custom_call.1} parent=1 // pred_fallthru
      _
    // Predicated region
    $region14: #{tpu_custom_call.1} parent=1 // pred_check
      _
    $region15: #{tpu_custom_call.1} parent=1 // pred_check_branch
      %23 = sbr.rel (0) target = $region17
    $region16: #{tpu_custom_call.1} parent=1 // pred_region
      _
    $region17: #{tpu_custom_call.1} parent=1 // pred_fallthru
      _
    // Predicated region
    $region18: #{tpu_custom_call.1} parent=1 // pred_check
      _
    $region19: #{tpu_custom_call.1} parent=1 // pred_check_branch
      %25 = sbr.rel (0) target = $region21
    $region20: #{tpu_custom_call.1} parent=1 // pred_region
      _
    $region21: #{tpu_custom_call.1} parent=1 // pred_fallthru
      _
    // Predicated region
    $region22: #{tpu_custom_call.1} parent=1 // pred_check
      _
    $region23: #{tpu_custom_call.1} parent=1 // pred_check_branch
      %27 = sbr.rel (0) target = $region25
    $region24: #{tpu_custom_call.1} parent=1 // pred_region
      _
    $region25: #{tpu_custom_call.1} parent=1 // pred_fallthru
      _
    // Predicated region
    $region26: #{tpu_custom_call.1} parent=1 // pred_check
      _
    $region27: #{tpu_custom_call.1} parent=1 // pred_check_branch
      %29 = sbr.rel (0) target = $region29
    $region28: #{tpu_custom_call.1} parent=1 // pred_region
      _
    $region29: #{tpu_custom_call.1} parent=1 // pred_fallthru
      _
    // Predicated region
    $region30: #{tpu_custom_call.1} parent=1 // pred_check
      _
    $region31: #{tpu_custom_call.1} parent=1 // pred_check_branch
      %31 = sbr.rel (0) target = $region33
    $region32: #{tpu_custom_call.1} parent=1 // pred_region
      _
    $region33: #{tpu_custom_call.1} parent=1 // pred_fallthru
      _
    %v32 = vld [vmem:[%s0] sm:$0xff]
    %v33 = vld [vmem:[%s0 + $0x8] sm:$0xff]
    %v34 = vld [vmem:[%s0 + $0x10] sm:$0xff]
    %v35 = vld [vmem:[%s0 + $0x18] sm:$0xff]
    %v36 = vld [vmem:[%s0 + $0x20] sm:$0xff]
    %v37 = vld [vmem:[%s0 + $0x28] sm:$0xff]
    %v38 = vld [vmem:[%s0 + $0x30] sm:$0xff]
    %v39 = vld [vmem:[%s0 + $0x38] sm:$0xff]
    %v40 = vld [vmem:[%s1] sm:$0xff]
    %v41 = vld [vmem:[%s1 + $0x8] sm:$0xff]
    %v42 = vld [vmem:[%s1 + $0x10] sm:$0xff]
    %v43 = vld [vmem:[%s1 + $0x18] sm:$0xff]
    %v44 = vld [vmem:[%s1 + $0x20] sm:$0xff]
    %v45 = vld [vmem:[%s1 + $0x28] sm:$0xff]
    %v46 = vld [vmem:[%s1 + $0x30] sm:$0xff]
    %v47 = vld [vmem:[%s1 + $0x38] sm:$0xff]
    %v48 = vld [vmem:[%s2] sm:$0xff]
    %v49 = vld [vmem:[%s2 + $0x8] sm:$0xff]
    %v50 = vld [vmem:[%s2 + $0x10] sm:$0xff]
    %v51 = vld [vmem:[%s2 + $0x18] sm:$0xff]
    %v52 = vld [vmem:[%s2 + $0x20] sm:$0xff]
    %v53 = vld [vmem:[%s2 + $0x28] sm:$0xff]
    %v54 = vld [vmem:[%s2 + $0x30] sm:$0xff]
    %v55 = vld [vmem:[%s2 + $0x38] sm:$0xff]
    %s56 = scalar_lea.vmem %s2, 64
    %v57 = vld [vmem:[%s56] sm:$0xff]
    %v58 = vld [vmem:[%s56 + $0x8] sm:$0xff]
    %v59 = vld [vmem:[%s56 + $0x10] sm:$0xff]
    %v60 = vld [vmem:[%s56 + $0x18] sm:$0xff]
    %v61 = vld [vmem:[%s56 + $0x20] sm:$0xff]
    %v62 = vld [vmem:[%s56 + $0x28] sm:$0xff]
    %v63 = vld [vmem:[%s56 + $0x30] sm:$0xff]
    %v64 = vld [vmem:[%s56 + $0x38] sm:$0xff]
    %v65 = vld [vmem:[%s3] sm:$0x1]
    %v67 = vperm.slane %v65, 0
    %s69 = scalar_lea.vmem %s3, 1
    %v70 = vld [vmem:[%s69] sm:$0x1]
    %v72 = vperm.slane %v70, 0
    %vm74 = vcmask 261120
    %v76 = vsel %vm74, %v32, 0
    %v79 = vsel %vm74, %v33, 0
    %v82 = vsel %vm74, %v34, 0
    %v85 = vsel %vm74, %v35, 0
    %v88 = vsel %vm74, %v36, 0
    %v91 = vsel %vm74, %v37, 0
    %v94 = vsel %vm74, %v38, 0
    %v97 = vsel %vm74, %v39, 0
    %v100 = vsel %vm74, %v40, 0
    %v103 = vsel %vm74, %v41, 0
    %v106 = vsel %vm74, %v42, 0
    %v109 = vsel %vm74, %v43, 0
    %v112 = vsel %vm74, %v44, 0
    %v115 = vsel %vm74, %v45, 0
    %v118 = vsel %vm74, %v46, 0
    %v121 = vsel %vm74, %v47, 0
    %123 = vmatpush.msra.mxu0 0.0
    %124 = vmatpush.msra.mxu0 0.0
    %125 = vmatpush.msra.mxu0 0.0
    %126 = vmatpush.msra.mxu0 0.0
    %127 = vmatpush.msra.mxu0 0.0
    %128 = vmatpush.msra.mxu0 0.0
    %129 = vmatpush.msra.mxu0 0.0
    %130 = vmatpush.msra.mxu0 0.0
    %131 = vmatpush.msra.mxu0 0.0
    %132 = vmatpush.msra.mxu0 0.0
    %133 = vmatpush.msra.mxu0 0.0
    %134 = vmatpush.msra.mxu0 0.0
    %135 = vmatpush.msra.mxu0 %v51
    %136 = vmatpush.msra.mxu0 %v50
    %137 = vmatpush.msra.mxu0 %v49
    %138 = vmatpush.msra.mxu0 %v48
    %139 = vmatmul.f32.gmra.mxu0 %v76
    %v140 = vpop.f32.mrf.mxu0
    %v141 = vadd.f32 0.0, %v140
    %142 = vmatmul.f32.gmra.mxu0 %v79
    %v143 = vpop.f32.mrf.mxu0
    %v144 = vadd.f32 0.0, %v143
    %145 = vmatmul.f32.gmra.mxu0 %v82
    %v146 = vpop.f32.mrf.mxu0
    %v147 = vadd.f32 0.0, %v146
    %148 = vmatmul.f32.gmra.mxu0 %v85
    %v149 = vpop.f32.mrf.mxu0
    %v150 = vadd.f32 0.0, %v149
    %151 = vmatmul.f32.gmra.mxu0 %v88
    %v152 = vpop.f32.mrf.mxu0
    %v153 = vadd.f32 0.0, %v152
    %154 = vmatmul.f32.gmra.mxu0 %v91
    %v155 = vpop.f32.mrf.mxu0
    %v156 = vadd.f32 0.0, %v155
    %157 = vmatmul.f32.gmra.mxu0 %v94
    %v158 = vpop.f32.mrf.mxu0
    %v159 = vadd.f32 0.0, %v158
    %160 = vmatmul.f32.gmra.mxu0 %v97
    %v161 = vpop.f32.mrf.mxu0
    %v162 = vadd.f32 0.0, %v161
    %163 = vmatmul.f32.gmra.mxu0 %v100
    %v164 = vpop.f32.mrf.mxu0
    %v165 = vadd.f32 0.0, %v164
    %166 = vmatmul.f32.gmra.mxu0 %v103
    %v167 = vpop.f32.mrf.mxu0
    %v168 = vadd.f32 0.0, %v167
    %169 = vmatmul.f32.gmra.mxu0 %v106
    %v170 = vpop.f32.mrf.mxu0
    %v171 = vadd.f32 0.0, %v170
    %172 = vmatmul.f32.gmra.mxu0 %v109
    %v173 = vpop.f32.mrf.mxu0
    %v174 = vadd.f32 0.0, %v173
    %175 = vmatmul.f32.gmra.mxu0 %v112
    %v176 = vpop.f32.mrf.mxu0
    %v177 = vadd.f32 0.0, %v176
    %178 = vmatmul.f32.gmra.mxu0 %v115
    %v179 = vpop.f32.mrf.mxu0
    %v180 = vadd.f32 0.0, %v179
    %181 = vmatmul.f32.gmra.mxu0 %v118
    %v182 = vpop.f32.mrf.mxu0
    %v183 = vadd.f32 0.0, %v182
    %184 = vmatmul.f32.gmra.mxu0 %v121
    %v185 = vpop.f32.mrf.mxu0
    %v186 = vadd.f32 0.0, %v185
    %187 = vdwg.mxu0
    %v188 = vadd.f32 %v141, %v67
    %v189 = vadd.f32 %v144, %v67
    %v190 = vadd.f32 %v147, %v67
    %v191 = vadd.f32 %v150, %v67
    %v192 = vadd.f32 %v153, %v67
    %v193 = vadd.f32 %v156, %v67
    %v194 = vadd.f32 %v159, %v67
    %v195 = vadd.f32 %v162, %v67
    %v196 = vxor.u32 %v188, 2147483648
    %v197 = vxor.u32 %v189, 2147483648
    %v198 = vxor.u32 %v190, 2147483648
    %v199 = vxor.u32 %v191, 2147483648
    %v200 = vxor.u32 %v192, 2147483648
    %v201 = vxor.u32 %v193, 2147483648
    %v202 = vxor.u32 %v194, 2147483648
    %v203 = vxor.u32 %v195, 2147483648
    %v204 = vmul.f32 %v196, 1.442695
    %v205 = vpow.pop %v204
    %v206 = vmul.f32 %v197, 1.442695
    %v207 = vpow.pop %v206
    %v208 = vmul.f32 %v198, 1.442695
    %v209 = vpow.pop %v208
    %v210 = vmul.f32 %v199, 1.442695
    %v211 = vpow.pop %v210
    %v212 = vmul.f32 %v200, 1.442695
    %v213 = vpow.pop %v212
    %v214 = vmul.f32 %v201, 1.442695
    %v215 = vpow.pop %v214
    %v216 = vmul.f32 %v202, 1.442695
    %v217 = vpow.pop %v216
    %v218 = vmul.f32 %v203, 1.442695
    %v219 = vpow.pop %v218
    %v220 = vadd.f32 %v205, 1.0
    %v221 = vadd.f32 %v207, 1.0
    %v222 = vadd.f32 %v209, 1.0
    %v223 = vadd.f32 %v211, 1.0
    %v224 = vadd.f32 %v213, 1.0
    %v225 = vadd.f32 %v215, 1.0
    %v226 = vadd.f32 %v217, 1.0
    %v227 = vadd.f32 %v219, 1.0
    %v228 = vrcp.pop %v220
    %v229 = vmul.f32 %v220, %v228
    %v230 = vsub.f32 1.0, %v229
    %v231 = vmul.f32 %v228, %v230
    %v232 = vadd.f32 %v228, %v231
    %vm233 = vweird.f32 %v220
    %vm234 = vweird.f32 %v228
    %vm235 = vmor %vm233, %vm234
    %v236 = vsel %vm235, %v228, %v232
    %v237 = vand.u32 2147483647, %v220
    %vm238 = vcmp.eq.f32.partialorder %v237, 8.507059e+37
    %v239 = vand.u32 %v220, 2147483648
    %v240 = vor.u32 1.1754944e-38, %v239
    %v241 = vsel %vm238, %v240, %v236
    %v242 = vmul.f32 1.0, %v241
    %v243 = vrcp.pop %v221
    %v244 = vmul.f32 %v221, %v243
    %v245 = vsub.f32 1.0, %v244
    %v246 = vmul.f32 %v243, %v245
    %v247 = vadd.f32 %v243, %v246
    %vm248 = vweird.f32 %v221
    %vm249 = vweird.f32 %v243
    %vm250 = vmor %vm248, %vm249
    %v251 = vsel %vm250, %v243, %v247
    %v252 = vand.u32 2147483647, %v221
    %vm253 = vcmp.eq.f32.partialorder %v252, 8.507059e+37
    %v254 = vand.u32 %v221, 2147483648
    %v255 = vor.u32 1.1754944e-38, %v254
    %v256 = vsel %vm253, %v255, %v251
    %v257 = vmul.f32 1.0, %v256
    %v258 = vrcp.pop %v222
    %v259 = vmul.f32 %v222, %v258
    %v260 = vsub.f32 1.0, %v259
    %v261 = vmul.f32 %v258, %v260
    %v262 = vadd.f32 %v258, %v261
    %vm263 = vweird.f32 %v222
    %vm264 = vweird.f32 %v258
    %vm265 = vmor %vm263, %vm264
    %v266 = vsel %vm265, %v258, %v262
    %v267 = vand.u32 2147483647, %v222
    %vm268 = vcmp.eq.f32.partialorder %v267, 8.507059e+37
    %v269 = vand.u32 %v222, 2147483648
    %v270 = vor.u32 1.1754944e-38, %v269
    %v271 = vsel %vm268, %v270, %v266
    %v272 = vmul.f32 1.0, %v271
    %v273 = vrcp.pop %v223
    %v274 = vmul.f32 %v223, %v273
    %v275 = vsub.f32 1.0, %v274
    %v276 = vmul.f32 %v273, %v275
    %v277 = vadd.f32 %v273, %v276
    %vm278 = vweird.f32 %v223
    %vm279 = vweird.f32 %v273
    %vm280 = vmor %vm278, %vm279
    %v281 = vsel %vm280, %v273, %v277
    %v282 = vand.u32 2147483647, %v223
    %vm283 = vcmp.eq.f32.partialorder %v282, 8.507059e+37
    %v284 = vand.u32 %v223, 2147483648
    %v285 = vor.u32 1.1754944e-38, %v284
    %v286 = vsel %vm283, %v285, %v281
    %v287 = vmul.f32 1.0, %v286
    %v288 = vrcp.pop %v224
    %v289 = vmul.f32 %v224, %v288
    %v290 = vsub.f32 1.0, %v289
    %v291 = vmul.f32 %v288, %v290
    %v292 = vadd.f32 %v288, %v291
    %vm293 = vweird.f32 %v224
    %vm294 = vweird.f32 %v288
    %vm295 = vmor %vm293, %vm294
    %v296 = vsel %vm295, %v288, %v292
    %v297 = vand.u32 2147483647, %v224
    %vm298 = vcmp.eq.f32.partialorder %v297, 8.507059e+37
    %v299 = vand.u32 %v224, 2147483648
    %v300 = vor.u32 1.1754944e-38, %v299
    %v301 = vsel %vm298, %v300, %v296
    %v302 = vmul.f32 1.0, %v301
    %v303 = vrcp.pop %v225
    %v304 = vmul.f32 %v225, %v303
    %v305 = vsub.f32 1.0, %v304
    %v306 = vmul.f32 %v303, %v305
    %v307 = vadd.f32 %v303, %v306
    %vm308 = vweird.f32 %v225
    %vm309 = vweird.f32 %v303
    %vm310 = vmor %vm308, %vm309
    %v311 = vsel %vm310, %v303, %v307
    %v312 = vand.u32 2147483647, %v225
    %vm313 = vcmp.eq.f32.partialorder %v312, 8.507059e+37
    %v314 = vand.u32 %v225, 2147483648
    %v315 = vor.u32 1.1754944e-38, %v314
    %v316 = vsel %vm313, %v315, %v311
    %v317 = vmul.f32 1.0, %v316
    %v318 = vrcp.pop %v226
    %v319 = vmul.f32 %v226, %v318
    %v320 = vsub.f32 1.0, %v319
    %v321 = vmul.f32 %v318, %v320
    %v322 = vadd.f32 %v318, %v321
    %vm323 = vweird.f32 %v226
    %vm324 = vweird.f32 %v318
    %vm325 = vmor %vm323, %vm324
    %v326 = vsel %vm325, %v318, %v322
    %v327 = vand.u32 2147483647, %v226
    %vm328 = vcmp.eq.f32.partialorder %v327, 8.507059e+37
    %v329 = vand.u32 %v226, 2147483648
    %v330 = vor.u32 1.1754944e-38, %v329
    %v331 = vsel %vm328, %v330, %v326
    %v332 = vmul.f32 1.0, %v331
    %v333 = vrcp.pop %v227
    %v334 = vmul.f32 %v227, %v333
    %v335 = vsub.f32 1.0, %v334
    %v336 = vmul.f32 %v333, %v335
    %v337 = vadd.f32 %v333, %v336
    %vm338 = vweird.f32 %v227
    %vm339 = vweird.f32 %v333
    %vm340 = vmor %vm338, %vm339
    %v341 = vsel %vm340, %v333, %v337
    %v342 = vand.u32 2147483647, %v227
    %vm343 = vcmp.eq.f32.partialorder %v342, 8.507059e+37
    %v344 = vand.u32 %v227, 2147483648
    %v345 = vor.u32 1.1754944e-38, %v344
    %v346 = vsel %vm343, %v345, %v341
    %v347 = vmul.f32 1.0, %v346
    %v348 = vtanh.pop %v188
    %v349 = vtanh.pop %v189
    %v350 = vtanh.pop %v190
    %v351 = vtanh.pop %v191
    %v352 = vtanh.pop %v192
    %v353 = vtanh.pop %v193
    %v354 = vtanh.pop %v194
    %v355 = vtanh.pop %v195
    %364 = vrot.lane.b32.xlu0 %v348, 64
    %v365 = vpop.permute.xlu0 %364
    %366 = vrot.lane.b32.xlu0 %v349, 64
    %v367 = vpop.permute.xlu0 %366
    %368 = vrot.lane.b32.xlu0 %v350, 64
    %v369 = vpop.permute.xlu0 %368
    %370 = vrot.lane.b32.xlu0 %v351, 64
    %v371 = vpop.permute.xlu0 %370
    %372 = vrot.lane.b32.xlu0 %v352, 64
    %v373 = vpop.permute.xlu0 %372
    %374 = vrot.lane.b32.xlu0 %v353, 64
    %v375 = vpop.permute.xlu0 %374
    %376 = vrot.lane.b32.xlu0 %v354, 64
    %v377 = vpop.permute.xlu0 %376
    %378 = vrot.lane.b32.xlu0 %v355, 64
    %v379 = vpop.permute.xlu0 %378
    %v388 = vmul.f32 %v242, %v365
    %v389 = vmul.f32 %v257, %v367
    %v390 = vmul.f32 %v272, %v369
    %v391 = vmul.f32 %v287, %v371
    %v392 = vmul.f32 %v302, %v373
    %v393 = vmul.f32 %v317, %v375
    %v394 = vmul.f32 %v332, %v377
    %v395 = vmul.f32 %v347, %v379
    %v396 = vtanh.pop %v388
    %v397 = vtanh.pop %v389
    %v398 = vtanh.pop %v390
    %v399 = vtanh.pop %v391
    %v400 = vtanh.pop %v392
    %v401 = vtanh.pop %v393
    %v402 = vtanh.pop %v394
    %v403 = vtanh.pop %v395
    %412 = vrot.lane.b32.xlu0 %v396, 96
    %v413 = vpop.permute.xlu0 %412
    %414 = vrot.lane.b32.xlu0 %v397, 96
    %v415 = vpop.permute.xlu0 %414
    %416 = vrot.lane.b32.xlu0 %v398, 96
    %v417 = vpop.permute.xlu0 %416
    %418 = vrot.lane.b32.xlu0 %v399, 96
    %v419 = vpop.permute.xlu0 %418
    %420 = vrot.lane.b32.xlu0 %v400, 96
    %v421 = vpop.permute.xlu0 %420
    %422 = vrot.lane.b32.xlu0 %v401, 96
    %v423 = vpop.permute.xlu0 %422
    %424 = vrot.lane.b32.xlu0 %v402, 96
    %v425 = vpop.permute.xlu0 %424
    %426 = vrot.lane.b32.xlu0 %v403, 96
    %v427 = vpop.permute.xlu0 %426
    %v436 = vmul.f32 %v242, %v413
    %v437 = vmul.f32 %v257, %v415
    %v438 = vmul.f32 %v272, %v417
    %v439 = vmul.f32 %v287, %v419
    %v440 = vmul.f32 %v302, %v421
    %v441 = vmul.f32 %v317, %v423
    %v442 = vmul.f32 %v332, %v425
    %v443 = vmul.f32 %v347, %v427
    %452 = vrot.lane.b32.xlu0 %v436, 32
    %v453 = vpop.permute.xlu0 %452
    %454 = vrot.lane.b32.xlu0 %v437, 32
    %v455 = vpop.permute.xlu0 %454
    %456 = vrot.lane.b32.xlu0 %v438, 32
    %v457 = vpop.permute.xlu0 %456
    %458 = vrot.lane.b32.xlu0 %v439, 32
    %v459 = vpop.permute.xlu0 %458
    %460 = vrot.lane.b32.xlu0 %v440, 32
    %v461 = vpop.permute.xlu0 %460
    %462 = vrot.lane.b32.xlu0 %v441, 32
    %v463 = vpop.permute.xlu0 %462
    %464 = vrot.lane.b32.xlu0 %v442, 32
    %v465 = vpop.permute.xlu0 %464
    %466 = vrot.lane.b32.xlu0 %v443, 32
    %v467 = vpop.permute.xlu0 %466
    %v468 = vsel %vm74, %v453, 0
    %v470 = vsel %vm74, %v455, 0
    %v472 = vsel %vm74, %v457, 0
    %v474 = vsel %vm74, %v459, 0
    %v476 = vsel %vm74, %v461, 0
    %v478 = vsel %vm74, %v463, 0
    %v480 = vsel %vm74, %v465, 0
    %v482 = vsel %vm74, %v467, 0
    %484 = vmatpush.msra.mxu0 0.0
    %485 = vmatpush.msra.mxu0 0.0
    %486 = vmatpush.msra.mxu0 0.0
    %487 = vmatpush.msra.mxu0 0.0
    %488 = vmatpush.msra.mxu0 0.0
    %489 = vmatpush.msra.mxu0 0.0
    %490 = vmatpush.msra.mxu0 0.0
    %491 = vmatpush.msra.mxu0 0.0
    %492 = vmatpush.msra.mxu0 0.0
    %493 = vmatpush.msra.mxu0 0.0
    %494 = vmatpush.msra.mxu0 0.0
    %495 = vmatpush.msra.mxu0 0.0
    %496 = vmatpush.msra.mxu0 %v60
    %497 = vmatpush.msra.mxu0 %v59
    %498 = vmatpush.msra.mxu0 %v58
    %499 = vmatpush.msra.mxu0 %v57
    %500 = vmatmul.f32.gmra.mxu0 %v468
    %v501 = vpop.f32.mrf.mxu0
    %v502 = vadd.f32 %v72, %v501
    %503 = vmatmul.f32.gmra.mxu0 %v470
    %v504 = vpop.f32.mrf.mxu0
    %v505 = vadd.f32 %v72, %v504
    %506 = vmatmul.f32.gmra.mxu0 %v472
    %v507 = vpop.f32.mrf.mxu0
    %v508 = vadd.f32 %v72, %v507
    %509 = vmatmul.f32.gmra.mxu0 %v474
    %v510 = vpop.f32.mrf.mxu0
    %v511 = vadd.f32 %v72, %v510
    %512 = vmatmul.f32.gmra.mxu0 %v476
    %v513 = vpop.f32.mrf.mxu0
    %v514 = vadd.f32 %v72, %v513
    %515 = vmatmul.f32.gmra.mxu0 %v478
    %v516 = vpop.f32.mrf.mxu0
    %v517 = vadd.f32 %v72, %v516
    %518 = vmatmul.f32.gmra.mxu0 %v480
    %v519 = vpop.f32.mrf.mxu0
    %v520 = vadd.f32 %v72, %v519
    %521 = vmatmul.f32.gmra.mxu0 %v482
    %v522 = vpop.f32.mrf.mxu0
    %v523 = vadd.f32 %v72, %v522
    %524 = vdwg.mxu0
    %v525 = vxor.u32 %v502, 2147483648
    %v526 = vxor.u32 %v505, 2147483648
    %v527 = vxor.u32 %v508, 2147483648
    %v528 = vxor.u32 %v511, 2147483648
    %v529 = vxor.u32 %v514, 2147483648
    %v530 = vxor.u32 %v517, 2147483648
    %v531 = vxor.u32 %v520, 2147483648
    %v532 = vxor.u32 %v523, 2147483648
    %v533 = vmul.f32 %v525, 1.442695
    %v534 = vpow.pop %v533
    %v535 = vmul.f32 %v526, 1.442695
    %v536 = vpow.pop %v535
    %v537 = vmul.f32 %v527, 1.442695
    %v538 = vpow.pop %v537
    %v539 = vmul.f32 %v528, 1.442695
    %v540 = vpow.pop %v539
    %v541 = vmul.f32 %v529, 1.442695
    %v542 = vpow.pop %v541
    %v543 = vmul.f32 %v530, 1.442695
    %v544 = vpow.pop %v543
    %v545 = vmul.f32 %v531, 1.442695
    %v546 = vpow.pop %v545
    %v547 = vmul.f32 %v532, 1.442695
    %v548 = vpow.pop %v547
    %v549 = vadd.f32 %v534, 1.0
    %v550 = vadd.f32 %v536, 1.0
    %v551 = vadd.f32 %v538, 1.0
    %v552 = vadd.f32 %v540, 1.0
    %v553 = vadd.f32 %v542, 1.0
    %v554 = vadd.f32 %v544, 1.0
    %v555 = vadd.f32 %v546, 1.0
    %v556 = vadd.f32 %v548, 1.0
    %v557 = vrcp.pop %v549
    %v558 = vmul.f32 %v549, %v557
    %v559 = vsub.f32 1.0, %v558
    %v560 = vmul.f32 %v557, %v559
    %v561 = vadd.f32 %v557, %v560
    %vm562 = vweird.f32 %v549
    %vm563 = vweird.f32 %v557
    %vm564 = vmor %vm562, %vm563
    %v565 = vsel %vm564, %v557, %v561
    %v566 = vand.u32 2147483647, %v549
    %vm567 = vcmp.eq.f32.partialorder %v566, 8.507059e+37
    %v568 = vand.u32 %v549, 2147483648
    %v569 = vor.u32 1.1754944e-38, %v568
    %v570 = vsel %vm567, %v569, %v565
    %v571 = vmul.f32 1.0, %v570
    %v572 = vrcp.pop %v550
    %v573 = vmul.f32 %v550, %v572
    %v574 = vsub.f32 1.0, %v573
    %v575 = vmul.f32 %v572, %v574
    %v576 = vadd.f32 %v572, %v575
    %vm577 = vweird.f32 %v550
    %vm578 = vweird.f32 %v572
    %vm579 = vmor %vm577, %vm578
    %v580 = vsel %vm579, %v572, %v576
    %v581 = vand.u32 2147483647, %v550
    %vm582 = vcmp.eq.f32.partialorder %v581, 8.507059e+37
    %v583 = vand.u32 %v550, 2147483648
    %v584 = vor.u32 1.1754944e-38, %v583
    %v585 = vsel %vm582, %v584, %v580
    %v586 = vmul.f32 1.0, %v585
    %v587 = vrcp.pop %v551
    %v588 = vmul.f32 %v551, %v587
    %v589 = vsub.f32 1.0, %v588
    %v590 = vmul.f32 %v587, %v589
    %v591 = vadd.f32 %v587, %v590
    %vm592 = vweird.f32 %v551
    %vm593 = vweird.f32 %v587
    %vm594 = vmor %vm592, %vm593
    %v595 = vsel %vm594, %v587, %v591
    %v596 = vand.u32 2147483647, %v551
    %vm597 = vcmp.eq.f32.partialorder %v596, 8.507059e+37
    %v598 = vand.u32 %v551, 2147483648
    %v599 = vor.u32 1.1754944e-38, %v598
    %v600 = vsel %vm597, %v599, %v595
    %v601 = vmul.f32 1.0, %v600
    %v602 = vrcp.pop %v552
    %v603 = vmul.f32 %v552, %v602
    %v604 = vsub.f32 1.0, %v603
    %v605 = vmul.f32 %v602, %v604
    %v606 = vadd.f32 %v602, %v605
    %vm607 = vweird.f32 %v552
    %vm608 = vweird.f32 %v602
    %vm609 = vmor %vm607, %vm608
    %v610 = vsel %vm609, %v602, %v606
    %v611 = vand.u32 2147483647, %v552
    %vm612 = vcmp.eq.f32.partialorder %v611, 8.507059e+37
    %v613 = vand.u32 %v552, 2147483648
    %v614 = vor.u32 1.1754944e-38, %v613
    %v615 = vsel %vm612, %v614, %v610
    %v616 = vmul.f32 1.0, %v615
    %v617 = vrcp.pop %v553
    %v618 = vmul.f32 %v553, %v617
    %v619 = vsub.f32 1.0, %v618
    %v620 = vmul.f32 %v617, %v619
    %v621 = vadd.f32 %v617, %v620
    %vm622 = vweird.f32 %v553
    %vm623 = vweird.f32 %v617
    %vm624 = vmor %vm622, %vm623
    %v625 = vsel %vm624, %v617, %v621
    %v626 = vand.u32 2147483647, %v553
    %vm627 = vcmp.eq.f32.partialorder %v626, 8.507059e+37
    %v628 = vand.u32 %v553, 2147483648
    %v629 = vor.u32 1.1754944e-38, %v628
    %v630 = vsel %vm627, %v629, %v625
    %v631 = vmul.f32 1.0, %v630
    %v632 = vrcp.pop %v554
    %v633 = vmul.f32 %v554, %v632
    %v634 = vsub.f32 1.0, %v633
    %v635 = vmul.f32 %v632, %v634
    %v636 = vadd.f32 %v632, %v635
    %vm637 = vweird.f32 %v554
    %vm638 = vweird.f32 %v632
    %vm639 = vmor %vm637, %vm638
    %v640 = vsel %vm639, %v632, %v636
    %v641 = vand.u32 2147483647, %v554
    %vm642 = vcmp.eq.f32.partialorder %v641, 8.507059e+37
    %v643 = vand.u32 %v554, 2147483648
    %v644 = vor.u32 1.1754944e-38, %v643
    %v645 = vsel %vm642, %v644, %v640
    %v646 = vmul.f32 1.0, %v645
    %v647 = vrcp.pop %v555
    %v648 = vmul.f32 %v555, %v647
    %v649 = vsub.f32 1.0, %v648
    %v650 = vmul.f32 %v647, %v649
    %v651 = vadd.f32 %v647, %v650
    %vm652 = vweird.f32 %v555
    %vm653 = vweird.f32 %v647
    %vm654 = vmor %vm652, %vm653
    %v655 = vsel %vm654, %v647, %v651
    %v656 = vand.u32 2147483647, %v555
    %vm657 = vcmp.eq.f32.partialorder %v656, 8.507059e+37
    %v658 = vand.u32 %v555, 2147483648
    %v659 = vor.u32 1.1754944e-38, %v658
    %v660 = vsel %vm657, %v659, %v655
    %v661 = vmul.f32 1.0, %v660
    %v662 = vrcp.pop %v556
    %v663 = vmul.f32 %v556, %v662
    %v664 = vsub.f32 1.0, %v663
    %v665 = vmul.f32 %v662, %v664
    %v666 = vadd.f32 %v662, %v665
    %vm667 = vweird.f32 %v556
    %vm668 = vweird.f32 %v662
    %vm669 = vmor %vm667, %vm668
    %v670 = vsel %vm669, %v662, %v666
    %v671 = vand.u32 2147483647, %v556
    %vm672 = vcmp.eq.f32.partialorder %v671, 8.507059e+37
    %v673 = vand.u32 %v556, 2147483648
    %v674 = vor.u32 1.1754944e-38, %v673
    %v675 = vsel %vm672, %v674, %v670
    %v676 = vmul.f32 1.0, %v675
    %v677 = vtanh.pop %v502
    %v678 = vtanh.pop %v505
    %v679 = vtanh.pop %v508
    %v680 = vtanh.pop %v511
    %v681 = vtanh.pop %v514
    %v682 = vtanh.pop %v517
    %v683 = vtanh.pop %v520
    %v684 = vtanh.pop %v523
    %693 = vrot.lane.b32.xlu0 %v677, 64
    %v694 = vpop.permute.xlu0 %693
    %695 = vrot.lane.b32.xlu0 %v678, 64
    %v696 = vpop.permute.xlu0 %695
    %697 = vrot.lane.b32.xlu0 %v679, 64
    %v698 = vpop.permute.xlu0 %697
    %699 = vrot.lane.b32.xlu0 %v680, 64
    %v700 = vpop.permute.xlu0 %699
    %701 = vrot.lane.b32.xlu0 %v681, 64
    %v702 = vpop.permute.xlu0 %701
    %703 = vrot.lane.b32.xlu0 %v682, 64
    %v704 = vpop.permute.xlu0 %703
    %705 = vrot.lane.b32.xlu0 %v683, 64
    %v706 = vpop.permute.xlu0 %705
    %707 = vrot.lane.b32.xlu0 %v684, 64
    %v708 = vpop.permute.xlu0 %707
    %v717 = vmul.f32 %v571, %v694
    %v718 = vmul.f32 %v586, %v696
    %v719 = vmul.f32 %v601, %v698
    %v720 = vmul.f32 %v616, %v700
    %v721 = vmul.f32 %v631, %v702
    %v722 = vmul.f32 %v646, %v704
    %v723 = vmul.f32 %v661, %v706
    %v724 = vmul.f32 %v676, %v708
    %v725 = vtanh.pop %v717
    %v726 = vtanh.pop %v718
    %v727 = vtanh.pop %v719
    %v728 = vtanh.pop %v720
    %v729 = vtanh.pop %v721
    %v730 = vtanh.pop %v722
    %v731 = vtanh.pop %v723
    %v732 = vtanh.pop %v724
    %741 = vrot.lane.b32.xlu0 %v725, 96
    %v742 = vpop.permute.xlu0 %741
    %743 = vrot.lane.b32.xlu0 %v726, 96
    %v744 = vpop.permute.xlu0 %743
    %745 = vrot.lane.b32.xlu0 %v727, 96
    %v746 = vpop.permute.xlu0 %745
    %747 = vrot.lane.b32.xlu0 %v728, 96
    %v748 = vpop.permute.xlu0 %747
    %749 = vrot.lane.b32.xlu0 %v729, 96
    %v750 = vpop.permute.xlu0 %749
    %751 = vrot.lane.b32.xlu0 %v730, 96
    %v752 = vpop.permute.xlu0 %751
    %753 = vrot.lane.b32.xlu0 %v731, 96
    %v754 = vpop.permute.xlu0 %753
    %755 = vrot.lane.b32.xlu0 %v732, 96
    %v756 = vpop.permute.xlu0 %755
    %v765 = vmul.f32 %v571, %v742
    %v766 = vmul.f32 %v586, %v744
    %v767 = vmul.f32 %v601, %v746
    %v768 = vmul.f32 %v616, %v748
    %v769 = vmul.f32 %v631, %v750
    %v770 = vmul.f32 %v646, %v752
    %v771 = vmul.f32 %v661, %v754
    %v772 = vmul.f32 %v676, %v756
    %773 = vmatpush.msra.mxu0 0.0
    %774 = vmatpush.msra.mxu0 0.0
    %775 = vmatpush.msra.mxu0 0.0
    %776 = vmatpush.msra.mxu0 0.0
    %777 = vmatpush.msra.mxu0 0.0
    %778 = vmatpush.msra.mxu0 0.0
    %779 = vmatpush.msra.mxu0 0.0
    %780 = vmatpush.msra.mxu0 0.0
    %781 = vmatpush.msra.mxu0 0.0
    %782 = vmatpush.msra.mxu0 0.0
    %783 = vmatpush.msra.mxu0 0.0
    %784 = vmatpush.msra.mxu0 0.0
    %785 = vmatpush.msra.mxu0 %v55
    %786 = vmatpush.msra.mxu0 %v54
    %787 = vmatpush.msra.mxu0 %v53
    %788 = vmatpush.msra.mxu0 %v52
    %789 = vmatmul.f32.gmra.mxu0 %v468
    %v790 = vpop.f32.mrf.mxu0
    %v791 = vadd.f32 0.0, %v790
    %792 = vmatmul.f32.gmra.mxu0 %v470
    %v793 = vpop.f32.mrf.mxu0
    %v794 = vadd.f32 0.0, %v793
    %795 = vmatmul.f32.gmra.mxu0 %v472
    %v796 = vpop.f32.mrf.mxu0
    %v797 = vadd.f32 0.0, %v796
    %798 = vmatmul.f32.gmra.mxu0 %v474
    %v799 = vpop.f32.mrf.mxu0
    %v800 = vadd.f32 0.0, %v799
    %801 = vmatmul.f32.gmra.mxu0 %v476
    %v802 = vpop.f32.mrf.mxu0
    %v803 = vadd.f32 0.0, %v802
    %804 = vmatmul.f32.gmra.mxu0 %v478
    %v805 = vpop.f32.mrf.mxu0
    %v806 = vadd.f32 0.0, %v805
    %807 = vmatmul.f32.gmra.mxu0 %v480
    %v808 = vpop.f32.mrf.mxu0
    %v809 = vadd.f32 0.0, %v808
    %810 = vmatmul.f32.gmra.mxu0 %v482
    %v811 = vpop.f32.mrf.mxu0
    %v812 = vadd.f32 0.0, %v811
    %813 = vdwg.mxu0
    %v814 = vadd.f32 %v165, %v791
    %v815 = vadd.f32 %v168, %v794
    %v816 = vadd.f32 %v171, %v797
    %v817 = vadd.f32 %v174, %v800
    %v818 = vadd.f32 %v177, %v803
    %v819 = vadd.f32 %v180, %v806
    %v820 = vadd.f32 %v183, %v809
    %v821 = vadd.f32 %v186, %v812
    %v822 = vadd.f32 %v814, %v67
    %v823 = vadd.f32 %v815, %v67
    %v824 = vadd.f32 %v816, %v67
    %v825 = vadd.f32 %v817, %v67
    %v826 = vadd.f32 %v818, %v67
    %v827 = vadd.f32 %v819, %v67
    %v828 = vadd.f32 %v820, %v67
    %v829 = vadd.f32 %v821, %v67
    %v830 = vxor.u32 %v822, 2147483648
    %v831 = vxor.u32 %v823, 2147483648
    %v832 = vxor.u32 %v824, 2147483648
    %v833 = vxor.u32 %v825, 2147483648
    %v834 = vxor.u32 %v826, 2147483648
    %v835 = vxor.u32 %v827, 2147483648
    %v836 = vxor.u32 %v828, 2147483648
    %v837 = vxor.u32 %v829, 2147483648
    %v838 = vmul.f32 %v830, 1.442695
    %v839 = vpow.pop %v838
    %v840 = vmul.f32 %v831, 1.442695
    %v841 = vpow.pop %v840
    %v842 = vmul.f32 %v832, 1.442695
    %v843 = vpow.pop %v842
    %v844 = vmul.f32 %v833, 1.442695
    %v845 = vpow.pop %v844
    %v846 = vmul.f32 %v834, 1.442695
    %v847 = vpow.pop %v846
    %v848 = vmul.f32 %v835, 1.442695
    %v849 = vpow.pop %v848
    %v850 = vmul.f32 %v836, 1.442695
    %v851 = vpow.pop %v850
    %v852 = vmul.f32 %v837, 1.442695
    %v853 = vpow.pop %v852
    %v854 = vadd.f32 %v839, 1.0
    %v855 = vadd.f32 %v841, 1.0
    %v856 = vadd.f32 %v843, 1.0
    %v857 = vadd.f32 %v845, 1.0
    %v858 = vadd.f32 %v847, 1.0
    %v859 = vadd.f32 %v849, 1.0
    %v860 = vadd.f32 %v851, 1.0
    %v861 = vadd.f32 %v853, 1.0
    %v862 = vrcp.pop %v854
    %v863 = vmul.f32 %v854, %v862
    %v864 = vsub.f32 1.0, %v863
    %v865 = vmul.f32 %v862, %v864
    %v866 = vadd.f32 %v862, %v865
    %vm867 = vweird.f32 %v854
    %vm868 = vweird.f32 %v862
    %vm869 = vmor %vm867, %vm868
    %v870 = vsel %vm869, %v862, %v866
    %v871 = vand.u32 2147483647, %v854
    %vm872 = vcmp.eq.f32.partialorder %v871, 8.507059e+37
    %v873 = vand.u32 %v854, 2147483648
    %v874 = vor.u32 1.1754944e-38, %v873
    %v875 = vsel %vm872, %v874, %v870
    %v876 = vmul.f32 1.0, %v875
    %v877 = vrcp.pop %v855
    %v878 = vmul.f32 %v855, %v877
    %v879 = vsub.f32 1.0, %v878
    %v880 = vmul.f32 %v877, %v879
    %v881 = vadd.f32 %v877, %v880
    %vm882 = vweird.f32 %v855
    %vm883 = vweird.f32 %v877
    %vm884 = vmor %vm882, %vm883
    %v885 = vsel %vm884, %v877, %v881
    %v886 = vand.u32 2147483647, %v855
    %vm887 = vcmp.eq.f32.partialorder %v886, 8.507059e+37
    %v888 = vand.u32 %v855, 2147483648
    %v889 = vor.u32 1.1754944e-38, %v888
    %v890 = vsel %vm887, %v889, %v885
    %v891 = vmul.f32 1.0, %v890
    %v892 = vrcp.pop %v856
    %v893 = vmul.f32 %v856, %v892
    %v894 = vsub.f32 1.0, %v893
    %v895 = vmul.f32 %v892, %v894
    %v896 = vadd.f32 %v892, %v895
    %vm897 = vweird.f32 %v856
    %vm898 = vweird.f32 %v892
    %vm899 = vmor %vm897, %vm898
    %v900 = vsel %vm899, %v892, %v896
    %v901 = vand.u32 2147483647, %v856
    %vm902 = vcmp.eq.f32.partialorder %v901, 8.507059e+37
    %v903 = vand.u32 %v856, 2147483648
    %v904 = vor.u32 1.1754944e-38, %v903
    %v905 = vsel %vm902, %v904, %v900
    %v906 = vmul.f32 1.0, %v905
    %v907 = vrcp.pop %v857
    %v908 = vmul.f32 %v857, %v907
    %v909 = vsub.f32 1.0, %v908
    %v910 = vmul.f32 %v907, %v909
    %v911 = vadd.f32 %v907, %v910
    %vm912 = vweird.f32 %v857
    %vm913 = vweird.f32 %v907
    %vm914 = vmor %vm912, %vm913
    %v915 = vsel %vm914, %v907, %v911
    %v916 = vand.u32 2147483647, %v857
    %vm917 = vcmp.eq.f32.partialorder %v916, 8.507059e+37
    %v918 = vand.u32 %v857, 2147483648
    %v919 = vor.u32 1.1754944e-38, %v918
    %v920 = vsel %vm917, %v919, %v915
    %v921 = vmul.f32 1.0, %v920
    %v922 = vrcp.pop %v858
    %v923 = vmul.f32 %v858, %v922
    %v924 = vsub.f32 1.0, %v923
    %v925 = vmul.f32 %v922, %v924
    %v926 = vadd.f32 %v922, %v925
    %vm927 = vweird.f32 %v858
    %vm928 = vweird.f32 %v922
    %vm929 = vmor %vm927, %vm928
    %v930 = vsel %vm929, %v922, %v926
    %v931 = vand.u32 2147483647, %v858
    %vm932 = vcmp.eq.f32.partialorder %v931, 8.507059e+37
    %v933 = vand.u32 %v858, 2147483648
    %v934 = vor.u32 1.1754944e-38, %v933
    %v935 = vsel %vm932, %v934, %v930
    %v936 = vmul.f32 1.0, %v935
    %v937 = vrcp.pop %v859
    %v938 = vmul.f32 %v859, %v937
    %v939 = vsub.f32 1.0, %v938
    %v940 = vmul.f32 %v937, %v939
    %v941 = vadd.f32 %v937, %v940
    %vm942 = vweird.f32 %v859
    %vm943 = vweird.f32 %v937
    %vm944 = vmor %vm942, %vm943
    %v945 = vsel %vm944, %v937, %v941
    %v946 = vand.u32 2147483647, %v859
    %vm947 = vcmp.eq.f32.partialorder %v946, 8.507059e+37
    %v948 = vand.u32 %v859, 2147483648
    %v949 = vor.u32 1.1754944e-38, %v948
    %v950 = vsel %vm947, %v949, %v945
    %v951 = vmul.f32 1.0, %v950
    %v952 = vrcp.pop %v860
    %v953 = vmul.f32 %v860, %v952
    %v954 = vsub.f32 1.0, %v953
    %v955 = vmul.f32 %v952, %v954
    %v956 = vadd.f32 %v952, %v955
    %vm957 = vweird.f32 %v860
    %vm958 = vweird.f32 %v952
    %vm959 = vmor %vm957, %vm958
    %v960 = vsel %vm959, %v952, %v956
    %v961 = vand.u32 2147483647, %v860
    %vm962 = vcmp.eq.f32.partialorder %v961, 8.507059e+37
    %v963 = vand.u32 %v860, 2147483648
    %v964 = vor.u32 1.1754944e-38, %v963
    %v965 = vsel %vm962, %v964, %v960
    %v966 = vmul.f32 1.0, %v965
    %v967 = vrcp.pop %v861
    %v968 = vmul.f32 %v861, %v967
    %v969 = vsub.f32 1.0, %v968
    %v970 = vmul.f32 %v967, %v969
    %v971 = vadd.f32 %v967, %v970
    %vm972 = vweird.f32 %v861
    %vm973 = vweird.f32 %v967
    %vm974 = vmor %vm972, %vm973
    %v975 = vsel %vm974, %v967, %v971
    %v976 = vand.u32 2147483647, %v861
    %vm977 = vcmp.eq.f32.partialorder %v976, 8.507059e+37
    %v978 = vand.u32 %v861, 2147483648
    %v979 = vor.u32 1.1754944e-38, %v978
    %v980 = vsel %vm977, %v979, %v975
    %v981 = vmul.f32 1.0, %v980
    %v982 = vtanh.pop %v822
    %v983 = vtanh.pop %v823
    %v984 = vtanh.pop %v824
    %v985 = vtanh.pop %v825
    %v986 = vtanh.pop %v826
    %v987 = vtanh.pop %v827
    %v988 = vtanh.pop %v828
    %v989 = vtanh.pop %v829
    %998 = vrot.lane.b32.xlu0 %v388, 32
    %v999 = vpop.permute.xlu0 %998
    %1000 = vrot.lane.b32.xlu0 %v389, 32
    %v1001 = vpop.permute.xlu0 %1000
    %1002 = vrot.lane.b32.xlu0 %v390, 32
    %v1003 = vpop.permute.xlu0 %1002
    %1004 = vrot.lane.b32.xlu0 %v391, 32
    %v1005 = vpop.permute.xlu0 %1004
    %1006 = vrot.lane.b32.xlu0 %v392, 32
    %v1007 = vpop.permute.xlu0 %1006
    %1008 = vrot.lane.b32.xlu0 %v393, 32
    %v1009 = vpop.permute.xlu0 %1008
    %1010 = vrot.lane.b32.xlu0 %v394, 32
    %v1011 = vpop.permute.xlu0 %1010
    %1012 = vrot.lane.b32.xlu0 %v395, 32
    %v1013 = vpop.permute.xlu0 %1012
    %v1022 = vmul.f32 %v876, %v999
    %v1023 = vmul.f32 %v891, %v1001
    %v1024 = vmul.f32 %v906, %v1003
    %v1025 = vmul.f32 %v921, %v1005
    %v1026 = vmul.f32 %v936, %v1007
    %v1027 = vmul.f32 %v951, %v1009
    %v1028 = vmul.f32 %v966, %v1011
    %v1029 = vmul.f32 %v981, %v1013
    %1038 = vrot.lane.b32.xlu0 %v982, 64
    %v1039 = vpop.permute.xlu0 %1038
    %1040 = vrot.lane.b32.xlu0 %v983, 64
    %v1041 = vpop.permute.xlu0 %1040
    %1042 = vrot.lane.b32.xlu0 %v984, 64
    %v1043 = vpop.permute.xlu0 %1042
    %1044 = vrot.lane.b32.xlu0 %v985, 64
    %v1045 = vpop.permute.xlu0 %1044
    %1046 = vrot.lane.b32.xlu0 %v986, 64
    %v1047 = vpop.permute.xlu0 %1046
    %1048 = vrot.lane.b32.xlu0 %v987, 64
    %v1049 = vpop.permute.xlu0 %1048
    %1050 = vrot.lane.b32.xlu0 %v988, 64
    %v1051 = vpop.permute.xlu0 %1050
    %1052 = vrot.lane.b32.xlu0 %v989, 64
    %v1053 = vpop.permute.xlu0 %1052
    %v1062 = vmul.f32 %v876, %v1039
    %v1063 = vmul.f32 %v891, %v1041
    %v1064 = vmul.f32 %v906, %v1043
    %v1065 = vmul.f32 %v921, %v1045
    %v1066 = vmul.f32 %v936, %v1047
    %v1067 = vmul.f32 %v951, %v1049
    %v1068 = vmul.f32 %v966, %v1051
    %v1069 = vmul.f32 %v981, %v1053
    %1078 = vrot.lane.b32.xlu0 %v1062, 32
    %v1079 = vpop.permute.xlu0 %1078
    %1080 = vrot.lane.b32.xlu0 %v1063, 32
    %v1081 = vpop.permute.xlu0 %1080
    %1082 = vrot.lane.b32.xlu0 %v1064, 32
    %v1083 = vpop.permute.xlu0 %1082
    %1084 = vrot.lane.b32.xlu0 %v1065, 32
    %v1085 = vpop.permute.xlu0 %1084
    %1086 = vrot.lane.b32.xlu0 %v1066, 32
    %v1087 = vpop.permute.xlu0 %1086
    %1088 = vrot.lane.b32.xlu0 %v1067, 32
    %v1089 = vpop.permute.xlu0 %1088
    %1090 = vrot.lane.b32.xlu0 %v1068, 32
    %v1091 = vpop.permute.xlu0 %1090
    %1092 = vrot.lane.b32.xlu0 %v1069, 32
    %v1093 = vpop.permute.xlu0 %1092
    %v1102 = vadd.f32 %v1022, %v1079
    %v1103 = vadd.f32 %v1023, %v1081
    %v1104 = vadd.f32 %v1024, %v1083
    %v1105 = vadd.f32 %v1025, %v1085
    %v1106 = vadd.f32 %v1026, %v1087
    %v1107 = vadd.f32 %v1027, %v1089
    %v1108 = vadd.f32 %v1028, %v1091
    %v1109 = vadd.f32 %v1029, %v1093
    %v1110 = vtanh.pop %v1102
    %v1111 = vtanh.pop %v1103
    %v1112 = vtanh.pop %v1104
    %v1113 = vtanh.pop %v1105
    %v1114 = vtanh.pop %v1106
    %v1115 = vtanh.pop %v1107
    %v1116 = vtanh.pop %v1108
    %v1117 = vtanh.pop %v1109
    %1126 = vrot.lane.b32.xlu0 %v1110, 64
    %v1127 = vpop.permute.xlu0 %1126
    %1128 = vrot.lane.b32.xlu0 %v1111, 64
    %v1129 = vpop.permute.xlu0 %1128
    %1130 = vrot.lane.b32.xlu0 %v1112, 64
    %v1131 = vpop.permute.xlu0 %1130
    %1132 = vrot.lane.b32.xlu0 %v1113, 64
    %v1133 = vpop.permute.xlu0 %1132
    %1134 = vrot.lane.b32.xlu0 %v1114, 64
    %v1135 = vpop.permute.xlu0 %1134
    %1136 = vrot.lane.b32.xlu0 %v1115, 64
    %v1137 = vpop.permute.xlu0 %1136
    %1138 = vrot.lane.b32.xlu0 %v1116, 64
    %v1139 = vpop.permute.xlu0 %1138
    %1140 = vrot.lane.b32.xlu0 %v1117, 64
    %v1141 = vpop.permute.xlu0 %1140
    %v1150 = vmul.f32 %v876, %v1127
    %v1151 = vmul.f32 %v891, %v1129
    %v1152 = vmul.f32 %v906, %v1131
    %v1153 = vmul.f32 %v921, %v1133
    %v1154 = vmul.f32 %v936, %v1135
    %v1155 = vmul.f32 %v951, %v1137
    %v1156 = vmul.f32 %v966, %v1139
    %v1157 = vmul.f32 %v981, %v1141
    %1166 = vrot.lane.b32.xlu0 %v765, 32
    %v1167 = vpop.permute.xlu0 %1166
    %1168 = vrot.lane.b32.xlu0 %v766, 32
    %v1169 = vpop.permute.xlu0 %1168
    %1170 = vrot.lane.b32.xlu0 %v767, 32
    %v1171 = vpop.permute.xlu0 %1170
    %1172 = vrot.lane.b32.xlu0 %v768, 32
    %v1173 = vpop.permute.xlu0 %1172
    %1174 = vrot.lane.b32.xlu0 %v769, 32
    %v1175 = vpop.permute.xlu0 %1174
    %1176 = vrot.lane.b32.xlu0 %v770, 32
    %v1177 = vpop.permute.xlu0 %1176
    %1178 = vrot.lane.b32.xlu0 %v771, 32
    %v1179 = vpop.permute.xlu0 %1178
    %1180 = vrot.lane.b32.xlu0 %v772, 32
    %v1181 = vpop.permute.xlu0 %1180
    %v1182 = vsel %vm74, %v1167, 0
    %v1184 = vsel %vm74, %v1169, 0
    %v1186 = vsel %vm74, %v1171, 0
    %v1188 = vsel %vm74, %v1173, 0
    %v1190 = vsel %vm74, %v1175, 0
    %v1192 = vsel %vm74, %v1177, 0
    %v1194 = vsel %vm74, %v1179, 0
    %v1196 = vsel %vm74, %v1181, 0
    %1198 = vmatpush.msra.mxu0 0.0
    %1199 = vmatpush.msra.mxu0 0.0
    %1200 = vmatpush.msra.mxu0 0.0
    %1201 = vmatpush.msra.mxu0 0.0
    %1202 = vmatpush.msra.mxu0 0.0
    %1203 = vmatpush.msra.mxu0 0.0
    %1204 = vmatpush.msra.mxu0 0.0
    %1205 = vmatpush.msra.mxu0 0.0
    %1206 = vmatpush.msra.mxu0 0.0
    %1207 = vmatpush.msra.mxu0 0.0
    %1208 = vmatpush.msra.mxu0 0.0
    %1209 = vmatpush.msra.mxu0 0.0
    %1210 = vmatpush.msra.mxu0 %v64
    %1211 = vmatpush.msra.mxu0 %v63
    %1212 = vmatpush.msra.mxu0 %v62
    %1213 = vmatpush.msra.mxu0 %v61
    %1214 = vmatmul.f32.gmra.mxu0 %v1182
    %v1215 = vpop.f32.mrf.mxu0
    %v1216 = vadd.f32 0.0, %v1215
    %1217 = vmatmul.f32.gmra.mxu0 %v1184
    %v1218 = vpop.f32.mrf.mxu0
    %v1219 = vadd.f32 0.0, %v1218
    %1220 = vmatmul.f32.gmra.mxu0 %v1186
    %v1221 = vpop.f32.mrf.mxu0
    %v1222 = vadd.f32 0.0, %v1221
    %1223 = vmatmul.f32.gmra.mxu0 %v1188
    %v1224 = vpop.f32.mrf.mxu0
    %v1225 = vadd.f32 0.0, %v1224
    %1226 = vmatmul.f32.gmra.mxu0 %v1190
    %v1227 = vpop.f32.mrf.mxu0
    %v1228 = vadd.f32 0.0, %v1227
    %1229 = vmatmul.f32.gmra.mxu0 %v1192
    %v1230 = vpop.f32.mrf.mxu0
    %v1231 = vadd.f32 0.0, %v1230
    %1232 = vmatmul.f32.gmra.mxu0 %v1194
    %v1233 = vpop.f32.mrf.mxu0
    %v1234 = vadd.f32 0.0, %v1233
    %1235 = vmatmul.f32.gmra.mxu0 %v1196
    %v1236 = vpop.f32.mrf.mxu0
    %v1237 = vadd.f32 0.0, %v1236
    %1238 = vdwg.mxu0
    %1247 = vrot.lane.b32.xlu0 %v1150, 32
    %v1248 = vpop.permute.xlu0 %1247
    %1249 = vrot.lane.b32.xlu0 %v1151, 32
    %v1250 = vpop.permute.xlu0 %1249
    %1251 = vrot.lane.b32.xlu0 %v1152, 32
    %v1252 = vpop.permute.xlu0 %1251
    %1253 = vrot.lane.b32.xlu0 %v1153, 32
    %v1254 = vpop.permute.xlu0 %1253
    %1255 = vrot.lane.b32.xlu0 %v1154, 32
    %v1256 = vpop.permute.xlu0 %1255
    %1257 = vrot.lane.b32.xlu0 %v1155, 32
    %v1258 = vpop.permute.xlu0 %1257
    %1259 = vrot.lane.b32.xlu0 %v1156, 32
    %v1260 = vpop.permute.xlu0 %1259
    %1261 = vrot.lane.b32.xlu0 %v1157, 32
    %v1262 = vpop.permute.xlu0 %1261
    %v1263 = vsel %vm74, %v1248, 0
    %v1265 = vsel %vm74, %v1250, 0
    %v1267 = vsel %vm74, %v1252, 0
    %v1269 = vsel %vm74, %v1254, 0
    %v1271 = vsel %vm74, %v1256, 0
    %v1273 = vsel %vm74, %v1258, 0
    %v1275 = vsel %vm74, %v1260, 0
    %v1277 = vsel %vm74, %v1262, 0
    %1279 = vmatpush.msra.mxu0 0.0
    %1280 = vmatpush.msra.mxu0 0.0
    %1281 = vmatpush.msra.mxu0 0.0
    %1282 = vmatpush.msra.mxu0 0.0
    %1283 = vmatpush.msra.mxu0 0.0
    %1284 = vmatpush.msra.mxu0 0.0
    %1285 = vmatpush.msra.mxu0 0.0
    %1286 = vmatpush.msra.mxu0 0.0
    %1287 = vmatpush.msra.mxu0 0.0
    %1288 = vmatpush.msra.mxu0 0.0
    %1289 = vmatpush.msra.mxu0 0.0
    %1290 = vmatpush.msra.mxu0 0.0
    %1291 = vmatpush.msra.mxu0 %v60
    %1292 = vmatpush.msra.mxu0 %v59
    %1293 = vmatpush.msra.mxu0 %v58
    %1294 = vmatpush.msra.mxu0 %v57
    %1295 = vmatmul.f32.gmra.mxu0 %v1263
    %v1296 = vpop.f32.mrf.mxu0
    %v1297 = vadd.f32 %v1216, %v1296
    %1298 = vmatmul.f32.gmra.mxu0 %v1265
    %v1299 = vpop.f32.mrf.mxu0
    %v1300 = vadd.f32 %v1219, %v1299
    %1301 = vmatmul.f32.gmra.mxu0 %v1267
    %v1302 = vpop.f32.mrf.mxu0
    %v1303 = vadd.f32 %v1222, %v1302
    %1304 = vmatmul.f32.gmra.mxu0 %v1269
    %v1305 = vpop.f32.mrf.mxu0
    %v1306 = vadd.f32 %v1225, %v1305
    %1307 = vmatmul.f32.gmra.mxu0 %v1271
    %v1308 = vpop.f32.mrf.mxu0
    %v1309 = vadd.f32 %v1228, %v1308
    %1310 = vmatmul.f32.gmra.mxu0 %v1273
    %v1311 = vpop.f32.mrf.mxu0
    %v1312 = vadd.f32 %v1231, %v1311
    %1313 = vmatmul.f32.gmra.mxu0 %v1275
    %v1314 = vpop.f32.mrf.mxu0
    %v1315 = vadd.f32 %v1234, %v1314
    %1316 = vmatmul.f32.gmra.mxu0 %v1277
    %v1317 = vpop.f32.mrf.mxu0
    %v1318 = vadd.f32 %v1237, %v1317
    %1319 = vdwg.mxu0
    %v1320 = vadd.f32 %v1297, %v72
    %v1321 = vadd.f32 %v1300, %v72
    %v1322 = vadd.f32 %v1303, %v72
    %v1323 = vadd.f32 %v1306, %v72
    %v1324 = vadd.f32 %v1309, %v72
    %v1325 = vadd.f32 %v1312, %v72
    %v1326 = vadd.f32 %v1315, %v72
    %v1327 = vadd.f32 %v1318, %v72
    %v1328 = vxor.u32 %v1320, 2147483648
    %v1329 = vxor.u32 %v1321, 2147483648
    %v1330 = vxor.u32 %v1322, 2147483648
    %v1331 = vxor.u32 %v1323, 2147483648
    %v1332 = vxor.u32 %v1324, 2147483648
    %v1333 = vxor.u32 %v1325, 2147483648
    %v1334 = vxor.u32 %v1326, 2147483648
    %v1335 = vxor.u32 %v1327, 2147483648
    %v1336 = vmul.f32 %v1328, 1.442695
    %v1337 = vpow.pop %v1336
    %v1338 = vmul.f32 %v1329, 1.442695
    %v1339 = vpow.pop %v1338
    %v1340 = vmul.f32 %v1330, 1.442695
    %v1341 = vpow.pop %v1340
    %v1342 = vmul.f32 %v1331, 1.442695
    %v1343 = vpow.pop %v1342
    %v1344 = vmul.f32 %v1332, 1.442695
    %v1345 = vpow.pop %v1344
    %v1346 = vmul.f32 %v1333, 1.442695
    %v1347 = vpow.pop %v1346
    %v1348 = vmul.f32 %v1334, 1.442695
    %v1349 = vpow.pop %v1348
    %v1350 = vmul.f32 %v1335, 1.442695
    %v1351 = vpow.pop %v1350
    %v1352 = vadd.f32 %v1337, 1.0
    %v1353 = vadd.f32 %v1339, 1.0
    %v1354 = vadd.f32 %v1341, 1.0
    %v1355 = vadd.f32 %v1343, 1.0
    %v1356 = vadd.f32 %v1345, 1.0
    %v1357 = vadd.f32 %v1347, 1.0
    %v1358 = vadd.f32 %v1349, 1.0
    %v1359 = vadd.f32 %v1351, 1.0
    %v1360 = vrcp.pop %v1352
    %v1361 = vmul.f32 %v1352, %v1360
    %v1362 = vsub.f32 1.0, %v1361
    %v1363 = vmul.f32 %v1360, %v1362
    %v1364 = vadd.f32 %v1360, %v1363
    %vm1365 = vweird.f32 %v1352
    %vm1366 = vweird.f32 %v1360
    %vm1367 = vmor %vm1365, %vm1366
    %v1368 = vsel %vm1367, %v1360, %v1364
    %v1369 = vand.u32 2147483647, %v1352
    %vm1370 = vcmp.eq.f32.partialorder %v1369, 8.507059e+37
    %v1371 = vand.u32 %v1352, 2147483648
    %v1372 = vor.u32 1.1754944e-38, %v1371
    %v1373 = vsel %vm1370, %v1372, %v1368
    %v1374 = vmul.f32 1.0, %v1373
    %v1375 = vrcp.pop %v1353
    %v1376 = vmul.f32 %v1353, %v1375
    %v1377 = vsub.f32 1.0, %v1376
    %v1378 = vmul.f32 %v1375, %v1377
    %v1379 = vadd.f32 %v1375, %v1378
    %vm1380 = vweird.f32 %v1353
    %vm1381 = vweird.f32 %v1375
    %vm1382 = vmor %vm1380, %vm1381
    %v1383 = vsel %vm1382, %v1375, %v1379
    %v1384 = vand.u32 2147483647, %v1353
    %vm1385 = vcmp.eq.f32.partialorder %v1384, 8.507059e+37
    %v1386 = vand.u32 %v1353, 2147483648
    %v1387 = vor.u32 1.1754944e-38, %v1386
    %v1388 = vsel %vm1385, %v1387, %v1383
    %v1389 = vmul.f32 1.0, %v1388
    %v1390 = vrcp.pop %v1354
    %v1391 = vmul.f32 %v1354, %v1390
    %v1392 = vsub.f32 1.0, %v1391
    %v1393 = vmul.f32 %v1390, %v1392
    %v1394 = vadd.f32 %v1390, %v1393
    %vm1395 = vweird.f32 %v1354
    %vm1396 = vweird.f32 %v1390
    %vm1397 = vmor %vm1395, %vm1396
    %v1398 = vsel %vm1397, %v1390, %v1394
    %v1399 = vand.u32 2147483647, %v1354
    %vm1400 = vcmp.eq.f32.partialorder %v1399, 8.507059e+37
    %v1401 = vand.u32 %v1354, 2147483648
    %v1402 = vor.u32 1.1754944e-38, %v1401
    %v1403 = vsel %vm1400, %v1402, %v1398
    %v1404 = vmul.f32 1.0, %v1403
    %v1405 = vrcp.pop %v1355
    %v1406 = vmul.f32 %v1355, %v1405
    %v1407 = vsub.f32 1.0, %v1406
    %v1408 = vmul.f32 %v1405, %v1407
    %v1409 = vadd.f32 %v1405, %v1408
    %vm1410 = vweird.f32 %v1355
    %vm1411 = vweird.f32 %v1405
    %vm1412 = vmor %vm1410, %vm1411
    %v1413 = vsel %vm1412, %v1405, %v1409
    %v1414 = vand.u32 2147483647, %v1355
    %vm1415 = vcmp.eq.f32.partialorder %v1414, 8.507059e+37
    %v1416 = vand.u32 %v1355, 2147483648
    %v1417 = vor.u32 1.1754944e-38, %v1416
    %v1418 = vsel %vm1415, %v1417, %v1413
    %v1419 = vmul.f32 1.0, %v1418
    %v1420 = vrcp.pop %v1356
    %v1421 = vmul.f32 %v1356, %v1420
    %v1422 = vsub.f32 1.0, %v1421
    %v1423 = vmul.f32 %v1420, %v1422
    %v1424 = vadd.f32 %v1420, %v1423
    %vm1425 = vweird.f32 %v1356
    %vm1426 = vweird.f32 %v1420
    %vm1427 = vmor %vm1425, %vm1426
    %v1428 = vsel %vm1427, %v1420, %v1424
    %v1429 = vand.u32 2147483647, %v1356
    %vm1430 = vcmp.eq.f32.partialorder %v1429, 8.507059e+37
    %v1431 = vand.u32 %v1356, 2147483648
    %v1432 = vor.u32 1.1754944e-38, %v1431
    %v1433 = vsel %vm1430, %v1432, %v1428
    %v1434 = vmul.f32 1.0, %v1433
    %v1435 = vrcp.pop %v1357
    %v1436 = vmul.f32 %v1357, %v1435
    %v1437 = vsub.f32 1.0, %v1436
    %v1438 = vmul.f32 %v1435, %v1437
    %v1439 = vadd.f32 %v1435, %v1438
    %vm1440 = vweird.f32 %v1357
    %vm1441 = vweird.f32 %v1435
    %vm1442 = vmor %vm1440, %vm1441
    %v1443 = vsel %vm1442, %v1435, %v1439
    %v1444 = vand.u32 2147483647, %v1357
    %vm1445 = vcmp.eq.f32.partialorder %v1444, 8.507059e+37
    %v1446 = vand.u32 %v1357, 2147483648
    %v1447 = vor.u32 1.1754944e-38, %v1446
    %v1448 = vsel %vm1445, %v1447, %v1443
    %v1449 = vmul.f32 1.0, %v1448
    %v1450 = vrcp.pop %v1358
    %v1451 = vmul.f32 %v1358, %v1450
    %v1452 = vsub.f32 1.0, %v1451
    %v1453 = vmul.f32 %v1450, %v1452
    %v1454 = vadd.f32 %v1450, %v1453
    %vm1455 = vweird.f32 %v1358
    %vm1456 = vweird.f32 %v1450
    %vm1457 = vmor %vm1455, %vm1456
    %v1458 = vsel %vm1457, %v1450, %v1454
    %v1459 = vand.u32 2147483647, %v1358
    %vm1460 = vcmp.eq.f32.partialorder %v1459, 8.507059e+37
    %v1461 = vand.u32 %v1358, 2147483648
    %v1462 = vor.u32 1.1754944e-38, %v1461
    %v1463 = vsel %vm1460, %v1462, %v1458
    %v1464 = vmul.f32 1.0, %v1463
    %v1465 = vrcp.pop %v1359
    %v1466 = vmul.f32 %v1359, %v1465
    %v1467 = vsub.f32 1.0, %v1466
    %v1468 = vmul.f32 %v1465, %v1467
    %v1469 = vadd.f32 %v1465, %v1468
    %vm1470 = vweird.f32 %v1359
    %vm1471 = vweird.f32 %v1465
    %vm1472 = vmor %vm1470, %vm1471
    %v1473 = vsel %vm1472, %v1465, %v1469
    %v1474 = vand.u32 2147483647, %v1359
    %vm1475 = vcmp.eq.f32.partialorder %v1474, 8.507059e+37
    %v1476 = vand.u32 %v1359, 2147483648
    %v1477 = vor.u32 1.1754944e-38, %v1476
    %v1478 = vsel %vm1475, %v1477, %v1473
    %v1479 = vmul.f32 1.0, %v1478
    %v1480 = vtanh.pop %v1320
    %v1481 = vtanh.pop %v1321
    %v1482 = vtanh.pop %v1322
    %v1483 = vtanh.pop %v1323
    %v1484 = vtanh.pop %v1324
    %v1485 = vtanh.pop %v1325
    %v1486 = vtanh.pop %v1326
    %v1487 = vtanh.pop %v1327
    %1496 = vrot.lane.b32.xlu0 %v717, 32
    %v1497 = vpop.permute.xlu0 %1496
    %1498 = vrot.lane.b32.xlu0 %v718, 32
    %v1499 = vpop.permute.xlu0 %1498
    %1500 = vrot.lane.b32.xlu0 %v719, 32
    %v1501 = vpop.permute.xlu0 %1500
    %1502 = vrot.lane.b32.xlu0 %v720, 32
    %v1503 = vpop.permute.xlu0 %1502
    %1504 = vrot.lane.b32.xlu0 %v721, 32
    %v1505 = vpop.permute.xlu0 %1504
    %1506 = vrot.lane.b32.xlu0 %v722, 32
    %v1507 = vpop.permute.xlu0 %1506
    %1508 = vrot.lane.b32.xlu0 %v723, 32
    %v1509 = vpop.permute.xlu0 %1508
    %1510 = vrot.lane.b32.xlu0 %v724, 32
    %v1511 = vpop.permute.xlu0 %1510
    %v1520 = vmul.f32 %v1374, %v1497
    %v1521 = vmul.f32 %v1389, %v1499
    %v1522 = vmul.f32 %v1404, %v1501
    %v1523 = vmul.f32 %v1419, %v1503
    %v1524 = vmul.f32 %v1434, %v1505
    %v1525 = vmul.f32 %v1449, %v1507
    %v1526 = vmul.f32 %v1464, %v1509
    %v1527 = vmul.f32 %v1479, %v1511
    %1536 = vrot.lane.b32.xlu0 %v1480, 64
    %v1537 = vpop.permute.xlu0 %1536
    %1538 = vrot.lane.b32.xlu0 %v1481, 64
    %v1539 = vpop.permute.xlu0 %1538
    %1540 = vrot.lane.b32.xlu0 %v1482, 64
    %v1541 = vpop.permute.xlu0 %1540
    %1542 = vrot.lane.b32.xlu0 %v1483, 64
    %v1543 = vpop.permute.xlu0 %1542
    %1544 = vrot.lane.b32.xlu0 %v1484, 64
    %v1545 = vpop.permute.xlu0 %1544
    %1546 = vrot.lane.b32.xlu0 %v1485, 64
    %v1547 = vpop.permute.xlu0 %1546
    %1548 = vrot.lane.b32.xlu0 %v1486, 64
    %v1549 = vpop.permute.xlu0 %1548
    %1550 = vrot.lane.b32.xlu0 %v1487, 64
    %v1551 = vpop.permute.xlu0 %1550
    %v1560 = vmul.f32 %v1374, %v1537
    %v1561 = vmul.f32 %v1389, %v1539
    %v1562 = vmul.f32 %v1404, %v1541
    %v1563 = vmul.f32 %v1419, %v1543
    %v1564 = vmul.f32 %v1434, %v1545
    %v1565 = vmul.f32 %v1449, %v1547
    %v1566 = vmul.f32 %v1464, %v1549
    %v1567 = vmul.f32 %v1479, %v1551
    %1576 = vrot.lane.b32.xlu0 %v1560, 32
    %v1577 = vpop.permute.xlu0 %1576
    %1578 = vrot.lane.b32.xlu0 %v1561, 32
    %v1579 = vpop.permute.xlu0 %1578
    %1580 = vrot.lane.b32.xlu0 %v1562, 32
    %v1581 = vpop.permute.xlu0 %1580
    %1582 = vrot.lane.b32.xlu0 %v1563, 32
    %v1583 = vpop.permute.xlu0 %1582
    %1584 = vrot.lane.b32.xlu0 %v1564, 32
    %v1585 = vpop.permute.xlu0 %1584
    %1586 = vrot.lane.b32.xlu0 %v1565, 32
    %v1587 = vpop.permute.xlu0 %1586
    %1588 = vrot.lane.b32.xlu0 %v1566, 32
    %v1589 = vpop.permute.xlu0 %1588
    %1590 = vrot.lane.b32.xlu0 %v1567, 32
    %v1591 = vpop.permute.xlu0 %1590
    %v1600 = vadd.f32 %v1520, %v1577
    %v1601 = vadd.f32 %v1521, %v1579
    %v1602 = vadd.f32 %v1522, %v1581
    %v1603 = vadd.f32 %v1523, %v1583
    %v1604 = vadd.f32 %v1524, %v1585
    %v1605 = vadd.f32 %v1525, %v1587
    %v1606 = vadd.f32 %v1526, %v1589
    %v1607 = vadd.f32 %v1527, %v1591
    %v1608 = vtanh.pop %v1600
    %v1609 = vtanh.pop %v1601
    %v1610 = vtanh.pop %v1602
    %v1611 = vtanh.pop %v1603
    %v1612 = vtanh.pop %v1604
    %v1613 = vtanh.pop %v1605
    %v1614 = vtanh.pop %v1606
    %v1615 = vtanh.pop %v1607
    %1624 = vrot.lane.b32.xlu0 %v1608, 64
    %v1625 = vpop.permute.xlu0 %1624
    %1626 = vrot.lane.b32.xlu0 %v1609, 64
    %v1627 = vpop.permute.xlu0 %1626
    %1628 = vrot.lane.b32.xlu0 %v1610, 64
    %v1629 = vpop.permute.xlu0 %1628
    %1630 = vrot.lane.b32.xlu0 %v1611, 64
    %v1631 = vpop.permute.xlu0 %1630
    %1632 = vrot.lane.b32.xlu0 %v1612, 64
    %v1633 = vpop.permute.xlu0 %1632
    %1634 = vrot.lane.b32.xlu0 %v1613, 64
    %v1635 = vpop.permute.xlu0 %1634
    %1636 = vrot.lane.b32.xlu0 %v1614, 64
    %v1637 = vpop.permute.xlu0 %1636
    %1638 = vrot.lane.b32.xlu0 %v1615, 64
    %v1639 = vpop.permute.xlu0 %1638
    %v1648 = vmul.f32 %v1374, %v1625
    %v1649 = vmul.f32 %v1389, %v1627
    %v1650 = vmul.f32 %v1404, %v1629
    %v1651 = vmul.f32 %v1419, %v1631
    %v1652 = vmul.f32 %v1434, %v1633
    %v1653 = vmul.f32 %v1449, %v1635
    %v1654 = vmul.f32 %v1464, %v1637
    %v1655 = vmul.f32 %v1479, %v1639
    %v1656 = vld [vmem:[%s4] sm:$0xff]
    %v1657 = vld [vmem:[%s4 + $0x8] sm:$0xff]
    %v1658 = vld [vmem:[%s4 + $0x10] sm:$0xff]
    %v1659 = vld [vmem:[%s4 + $0x18] sm:$0xff]
    %v1660 = vld [vmem:[%s5] sm:$0x1]
    %v1662 = vperm.slane %v1660, 0
    %1672 = vrot.lane.b32.xlu0 %v1648, 32
    %v1673 = vpop.permute.xlu0 %1672
    %1674 = vrot.lane.b32.xlu0 %v1649, 32
    %v1675 = vpop.permute.xlu0 %1674
    %1676 = vrot.lane.b32.xlu0 %v1650, 32
    %v1677 = vpop.permute.xlu0 %1676
    %1678 = vrot.lane.b32.xlu0 %v1651, 32
    %v1679 = vpop.permute.xlu0 %1678
    %1680 = vrot.lane.b32.xlu0 %v1652, 32
    %v1681 = vpop.permute.xlu0 %1680
    %1682 = vrot.lane.b32.xlu0 %v1653, 32
    %v1683 = vpop.permute.xlu0 %1682
    %1684 = vrot.lane.b32.xlu0 %v1654, 32
    %v1685 = vpop.permute.xlu0 %1684
    %1686 = vrot.lane.b32.xlu0 %v1655, 32
    %v1687 = vpop.permute.xlu0 %1686
    %v1688 = vsel %vm74, %v1673, 0
    %v1690 = vsel %vm74, %v1675, 0
    %v1692 = vsel %vm74, %v1677, 0
    %v1694 = vsel %vm74, %v1679, 0
    %v1696 = vsel %vm74, %v1681, 0
    %v1698 = vsel %vm74, %v1683, 0
    %v1700 = vsel %vm74, %v1685, 0
    %v1702 = vsel %vm74, %v1687, 0
    %1704 = vmatpush.msra.mxu0 0.0
    %1705 = vmatpush.msra.mxu0 0.0
    %1706 = vmatpush.msra.mxu0 0.0
    %1707 = vmatpush.msra.mxu0 0.0
    %1708 = vmatpush.msra.mxu0 0.0
    %1709 = vmatpush.msra.mxu0 0.0
    %1710 = vmatpush.msra.mxu0 0.0
    %1711 = vmatpush.msra.mxu0 0.0
    %1712 = vmatpush.msra.mxu0 0.0
    %1713 = vmatpush.msra.mxu0 0.0
    %1714 = vmatpush.msra.mxu0 0.0
    %1715 = vmatpush.msra.mxu0 0.0
    %1716 = vmatpush.msra.mxu0 %v1659
    %1717 = vmatpush.msra.mxu0 %v1658
    %1718 = vmatpush.msra.mxu0 %v1657
    %1719 = vmatpush.msra.mxu0 %v1656
    %1720 = vmatmul.f32.gmra.mxu0 %v1688
    %v1721 = vpop.f32.mrf.mxu0
    %v1722 = vadd.f32 %v1662, %v1721
    %1723 = vmatmul.f32.gmra.mxu0 %v1690
    %v1724 = vpop.f32.mrf.mxu0
    %v1725 = vadd.f32 %v1662, %v1724
    %1726 = vmatmul.f32.gmra.mxu0 %v1692
    %v1727 = vpop.f32.mrf.mxu0
    %v1728 = vadd.f32 %v1662, %v1727
    %1729 = vmatmul.f32.gmra.mxu0 %v1694
    %v1730 = vpop.f32.mrf.mxu0
    %v1731 = vadd.f32 %v1662, %v1730
    %1732 = vmatmul.f32.gmra.mxu0 %v1696
    %v1733 = vpop.f32.mrf.mxu0
    %v1734 = vadd.f32 %v1662, %v1733
    %1735 = vmatmul.f32.gmra.mxu0 %v1698
    %v1736 = vpop.f32.mrf.mxu0
    %v1737 = vadd.f32 %v1662, %v1736
    %1738 = vmatmul.f32.gmra.mxu0 %v1700
    %v1739 = vpop.f32.mrf.mxu0
    %v1740 = vadd.f32 %v1662, %v1739
    %1741 = vmatmul.f32.gmra.mxu0 %v1702
    %v1742 = vpop.f32.mrf.mxu0
    %v1743 = vadd.f32 %v1662, %v1742
    %1744 = vdwg.mxu0
    %v1745 = vmax.f32 %v1722, 0.0
    %v1746 = vmax.f32 %v1725, 0.0
    %v1747 = vmax.f32 %v1728, 0.0
    %v1748 = vmax.f32 %v1731, 0.0
    %v1749 = vmax.f32 %v1734, 0.0
    %v1750 = vmax.f32 %v1737, 0.0
    %v1751 = vmax.f32 %v1740, 0.0
    %v1752 = vmax.f32 %v1743, 0.0
    %v1753 = vld [vmem:[%s6] sm:$0x1]
    %v1755 = vperm.slane %v1753, 0
    %v1757 = vmul.f32 %v1745, %v1755
    %v1758 = vmul.f32 %v1746, %v1755
    %v1759 = vmul.f32 %v1747, %v1755
    %v1760 = vmul.f32 %v1748, %v1755
    %v1761 = vmul.f32 %v1749, %v1755
    %v1762 = vmul.f32 %v1750, %v1755
    %v1763 = vmul.f32 %v1751, %v1755
    %v1764 = vmul.f32 %v1752, %v1755
    %v1765 = vsel %vm74, %v1757, 0.0
    %1766 = vadd.xlane.f32.xlu0 %v1765
    %v1767 = vpop.xlane.xlu0 %1766
    %v1768 = vsel %vm74, %v1758, 0.0
    %1769 = vadd.xlane.f32.xlu0 %v1768
    %v1770 = vpop.xlane.xlu0 %1769
    %v1771 = vsel %vm74, %v1759, 0.0
    %1772 = vadd.xlane.f32.xlu0 %v1771
    %v1773 = vpop.xlane.xlu0 %1772
    %v1774 = vsel %vm74, %v1760, 0.0
    %1775 = vadd.xlane.f32.xlu0 %v1774
    %v1776 = vpop.xlane.xlu0 %1775
    %v1777 = vsel %vm74, %v1761, 0.0
    %1778 = vadd.xlane.f32.xlu0 %v1777
    %v1779 = vpop.xlane.xlu0 %1778
    %v1780 = vsel %vm74, %v1762, 0.0
    %1781 = vadd.xlane.f32.xlu0 %v1780
    %v1782 = vpop.xlane.xlu0 %1781
    %v1783 = vsel %vm74, %v1763, 0.0
    %1784 = vadd.xlane.f32.xlu0 %v1783
    %v1785 = vpop.xlane.xlu0 %1784
    %v1786 = vsel %vm74, %v1764, 0.0
    %1787 = vadd.xlane.f32.xlu0 %v1786
    %v1788 = vpop.xlane.xlu0 %1787
    %v1789 = vld [vmem:[#allocation2] sm:$0x1]
    %v1791 = vperm.slane %v1789, 0
    %v1793 = vadd.f32 %v1767, %v1791
    %v1794 = vadd.f32 %v1770, %v1791
    %v1795 = vadd.f32 %v1773, %v1791
    %v1796 = vadd.f32 %v1776, %v1791
    %v1797 = vadd.f32 %v1779, %v1791
    %v1798 = vadd.f32 %v1782, %v1791
    %v1799 = vadd.f32 %v1785, %v1791
    %v1800 = vadd.f32 %v1788, %v1791
    %v1801 = vxor.u32 %v1793, 2147483648
    %v1802 = vxor.u32 %v1794, 2147483648
    %v1803 = vxor.u32 %v1795, 2147483648
    %v1804 = vxor.u32 %v1796, 2147483648
    %v1805 = vxor.u32 %v1797, 2147483648
    %v1806 = vxor.u32 %v1798, 2147483648
    %v1807 = vxor.u32 %v1799, 2147483648
    %v1808 = vxor.u32 %v1800, 2147483648
    %v1809 = vmul.f32 %v1801, 1.442695
    %v1810 = vpow.pop %v1809
    %v1811 = vmul.f32 %v1802, 1.442695
    %v1812 = vpow.pop %v1811
    %v1813 = vmul.f32 %v1803, 1.442695
    %v1814 = vpow.pop %v1813
    %v1815 = vmul.f32 %v1804, 1.442695
    %v1816 = vpow.pop %v1815
    %v1817 = vmul.f32 %v1805, 1.442695
    %v1818 = vpow.pop %v1817
    %v1819 = vmul.f32 %v1806, 1.442695
    %v1820 = vpow.pop %v1819
    %v1821 = vmul.f32 %v1807, 1.442695
    %v1822 = vpow.pop %v1821
    %v1823 = vmul.f32 %v1808, 1.442695
    %v1824 = vpow.pop %v1823
    %v1825 = vadd.f32 %v1810, 1.0
    %v1826 = vadd.f32 %v1812, 1.0
    %v1827 = vadd.f32 %v1814, 1.0
    %v1828 = vadd.f32 %v1816, 1.0
    %v1829 = vadd.f32 %v1818, 1.0
    %v1830 = vadd.f32 %v1820, 1.0
    %v1831 = vadd.f32 %v1822, 1.0
    %v1832 = vadd.f32 %v1824, 1.0
    %v1833 = vrcp.pop %v1825
    %v1834 = vmul.f32 %v1825, %v1833
    %v1835 = vsub.f32 1.0, %v1834
    %v1836 = vmul.f32 %v1833, %v1835
    %v1837 = vadd.f32 %v1833, %v1836
    %vm1838 = vweird.f32 %v1825
    %vm1839 = vweird.f32 %v1833
    %vm1840 = vmor %vm1838, %vm1839
    %v1841 = vsel %vm1840, %v1833, %v1837
    %v1842 = vand.u32 2147483647, %v1825
    %vm1843 = vcmp.eq.f32.partialorder %v1842, 8.507059e+37
    %v1844 = vand.u32 %v1825, 2147483648
    %v1845 = vor.u32 1.1754944e-38, %v1844
    %v1846 = vsel %vm1843, %v1845, %v1841
    %v1847 = vmul.f32 1.0, %v1846
    %v1848 = vrcp.pop %v1826
    %v1849 = vmul.f32 %v1826, %v1848
    %v1850 = vsub.f32 1.0, %v1849
    %v1851 = vmul.f32 %v1848, %v1850
    %v1852 = vadd.f32 %v1848, %v1851
    %vm1853 = vweird.f32 %v1826
    %vm1854 = vweird.f32 %v1848
    %vm1855 = vmor %vm1853, %vm1854
    %v1856 = vsel %vm1855, %v1848, %v1852
    %v1857 = vand.u32 2147483647, %v1826
    %vm1858 = vcmp.eq.f32.partialorder %v1857, 8.507059e+37
    %v1859 = vand.u32 %v1826, 2147483648
    %v1860 = vor.u32 1.1754944e-38, %v1859
    %v1861 = vsel %vm1858, %v1860, %v1856
    %v1862 = vmul.f32 1.0, %v1861
    %v1863 = vrcp.pop %v1827
    %v1864 = vmul.f32 %v1827, %v1863
    %v1865 = vsub.f32 1.0, %v1864
    %v1866 = vmul.f32 %v1863, %v1865
    %v1867 = vadd.f32 %v1863, %v1866
    %vm1868 = vweird.f32 %v1827
    %vm1869 = vweird.f32 %v1863
    %vm1870 = vmor %vm1868, %vm1869
    %v1871 = vsel %vm1870, %v1863, %v1867
    %v1872 = vand.u32 2147483647, %v1827
    %vm1873 = vcmp.eq.f32.partialorder %v1872, 8.507059e+37
    %v1874 = vand.u32 %v1827, 2147483648
    %v1875 = vor.u32 1.1754944e-38, %v1874
    %v1876 = vsel %vm1873, %v1875, %v1871
    %v1877 = vmul.f32 1.0, %v1876
    %v1878 = vrcp.pop %v1828
    %v1879 = vmul.f32 %v1828, %v1878
    %v1880 = vsub.f32 1.0, %v1879
    %v1881 = vmul.f32 %v1878, %v1880
    %v1882 = vadd.f32 %v1878, %v1881
    %vm1883 = vweird.f32 %v1828
    %vm1884 = vweird.f32 %v1878
    %vm1885 = vmor %vm1883, %vm1884
    %v1886 = vsel %vm1885, %v1878, %v1882
    %v1887 = vand.u32 2147483647, %v1828
    %vm1888 = vcmp.eq.f32.partialorder %v1887, 8.507059e+37
    %v1889 = vand.u32 %v1828, 2147483648
    %v1890 = vor.u32 1.1754944e-38, %v1889
    %v1891 = vsel %vm1888, %v1890, %v1886
    %v1892 = vmul.f32 1.0, %v1891
    %v1893 = vrcp.pop %v1829
    %v1894 = vmul.f32 %v1829, %v1893
    %v1895 = vsub.f32 1.0, %v1894
    %v1896 = vmul.f32 %v1893, %v1895
    %v1897 = vadd.f32 %v1893, %v1896
    %vm1898 = vweird.f32 %v1829
    %vm1899 = vweird.f32 %v1893
    %vm1900 = vmor %vm1898, %vm1899
    %v1901 = vsel %vm1900, %v1893, %v1897
    %v1902 = vand.u32 2147483647, %v1829
    %vm1903 = vcmp.eq.f32.partialorder %v1902, 8.507059e+37
    %v1904 = vand.u32 %v1829, 2147483648
    %v1905 = vor.u32 1.1754944e-38, %v1904
    %v1906 = vsel %vm1903, %v1905, %v1901
    %v1907 = vmul.f32 1.0, %v1906
    %v1908 = vrcp.pop %v1830
    %v1909 = vmul.f32 %v1830, %v1908
    %v1910 = vsub.f32 1.0, %v1909
    %v1911 = vmul.f32 %v1908, %v1910
    %v1912 = vadd.f32 %v1908, %v1911
    %vm1913 = vweird.f32 %v1830
    %vm1914 = vweird.f32 %v1908
    %vm1915 = vmor %vm1913, %vm1914
    %v1916 = vsel %vm1915, %v1908, %v1912
    %v1917 = vand.u32 2147483647, %v1830
    %vm1918 = vcmp.eq.f32.partialorder %v1917, 8.507059e+37
    %v1919 = vand.u32 %v1830, 2147483648
    %v1920 = vor.u32 1.1754944e-38, %v1919
    %v1921 = vsel %vm1918, %v1920, %v1916
    %v1922 = vmul.f32 1.0, %v1921
    %v1923 = vrcp.pop %v1831
    %v1924 = vmul.f32 %v1831, %v1923
    %v1925 = vsub.f32 1.0, %v1924
    %v1926 = vmul.f32 %v1923, %v1925
    %v1927 = vadd.f32 %v1923, %v1926
    %vm1928 = vweird.f32 %v1831
    %vm1929 = vweird.f32 %v1923
    %vm1930 = vmor %vm1928, %vm1929
    %v1931 = vsel %vm1930, %v1923, %v1927
    %v1932 = vand.u32 2147483647, %v1831
    %vm1933 = vcmp.eq.f32.partialorder %v1932, 8.507059e+37
    %v1934 = vand.u32 %v1831, 2147483648
    %v1935 = vor.u32 1.1754944e-38, %v1934
    %v1936 = vsel %vm1933, %v1935, %v1931
    %v1937 = vmul.f32 1.0, %v1936
    %v1938 = vrcp.pop %v1832
    %v1939 = vmul.f32 %v1832, %v1938
    %v1940 = vsub.f32 1.0, %v1939
    %v1941 = vmul.f32 %v1938, %v1940
    %v1942 = vadd.f32 %v1938, %v1941
    %vm1943 = vweird.f32 %v1832
    %vm1944 = vweird.f32 %v1938
    %vm1945 = vmor %vm1943, %vm1944
    %v1946 = vsel %vm1945, %v1938, %v1942
    %v1947 = vand.u32 2147483647, %v1832
    %vm1948 = vcmp.eq.f32.partialorder %v1947, 8.507059e+37
    %v1949 = vand.u32 %v1832, 2147483648
    %v1950 = vor.u32 1.1754944e-38, %v1949
    %v1951 = vsel %vm1948, %v1950, %v1946
    %v1952 = vmul.f32 1.0, %v1951
    %1953 = vst [vmem:[#allocation3] sm:$0xff] 0.0
    %1954 = vst [vmem:[#allocation3 + $0x8] sm:$0xff] 0.0
    %1955 = vst [vmem:[#allocation3 + $0x10] sm:$0xff] 0.0
    %1956 = vst [vmem:[#allocation3 + $0x18] sm:$0xff] 0.0
    %1957 = vst [vmem:[#allocation3 + $0x20] sm:$0xff] 0.0
    %1958 = vst [vmem:[#allocation3 + $0x28] sm:$0xff] 0.0
    %1959 = vst [vmem:[#allocation3 + $0x30] sm:$0xff] 0.0
    %1960 = vst [vmem:[#allocation3 + $0x38] sm:$0xff] 0.0
    %1969 = vst.msk [vmem:[#allocation3] sm:$0xff] %vm74, %v1673
    %1970 = vst.msk [vmem:[#allocation3 + $0x8] sm:$0xff] %vm74, %v1675
    %1971 = vst.msk [vmem:[#allocation3 + $0x10] sm:$0xff] %vm74, %v1677
    %1972 = vst.msk [vmem:[#allocation3 + $0x18] sm:$0xff] %vm74, %v1679
    %1973 = vst.msk [vmem:[#allocation3 + $0x20] sm:$0xff] %vm74, %v1681
    %1974 = vst.msk [vmem:[#allocation3 + $0x28] sm:$0xff] %vm74, %v1683
    %1975 = vst.msk [vmem:[#allocation3 + $0x30] sm:$0xff] %vm74, %v1685
    %1976 = vst.msk [vmem:[#allocation3 + $0x38] sm:$0xff] %vm74, %v1687
    %1978 = vset.pattern.permute.xlu0 0
    %1979 = vperm.xlu0 %1978, %v1847
    %v1980 = vpop.permute.xlu0 %1979
    %1983 = vset.pattern.permute.xlu0 0
    %1984 = vperm.xlu0 %1983, %v1862
    %v1985 = vpop.permute.xlu0 %1984
    %1988 = vset.pattern.permute.xlu0 0
    %1989 = vperm.xlu0 %1988, %v1877
    %v1990 = vpop.permute.xlu0 %1989
    %1993 = vset.pattern.permute.xlu0 0
    %1994 = vperm.xlu0 %1993, %v1892
    %v1995 = vpop.permute.xlu0 %1994
    %1998 = vset.pattern.permute.xlu0 0
    %1999 = vperm.xlu0 %1998, %v1907
    %v2000 = vpop.permute.xlu0 %1999
    %2003 = vset.pattern.permute.xlu0 0
    %2004 = vperm.xlu0 %2003, %v1922
    %v2005 = vpop.permute.xlu0 %2004
    %2008 = vset.pattern.permute.xlu0 0
    %2009 = vperm.xlu0 %2008, %v1937
    %v2010 = vpop.permute.xlu0 %2009
    %2013 = vset.pattern.permute.xlu0 0
    %2014 = vperm.xlu0 %2013, %v1952
    %v2015 = vpop.permute.xlu0 %2014
    %vm2017 = vcmask 523520
    %2018 = vst.msk [vmem:[#allocation3] sm:$0xff] %vm2017, %v1980
    %2019 = vst.msk [vmem:[#allocation3 + $0x8] sm:$0xff] %vm2017, %v1985
    %2020 = vst.msk [vmem:[#allocation3 + $0x10] sm:$0xff] %vm2017, %v1990
    %2021 = vst.msk [vmem:[#allocation3 + $0x18] sm:$0xff] %vm2017, %v1995
    %2022 = vst.msk [vmem:[#allocation3 + $0x20] sm:$0xff] %vm2017, %v2000
    %2023 = vst.msk [vmem:[#allocation3 + $0x28] sm:$0xff] %vm2017, %v2005
    %2024 = vst.msk [vmem:[#allocation3 + $0x30] sm:$0xff] %vm2017, %v2010
    %2025 = vst.msk [vmem:[#allocation3 + $0x38] sm:$0xff] %vm2017, %v2015
    // Predicated region
    $region34: #{tpu_custom_call.1} parent=1 // pred_check
      _
    $region35: #{tpu_custom_call.1} parent=1 // pred_check_branch
      %2027 = sbr.rel (0) target = $region37
    $region36: #{tpu_custom_call.1} parent=1 // pred_region
      %2029 = vsyncadd [#allocation4], 0
      %s2030 = sshll.u32 [#allocation3], 4
      %s2031 = int_to_ptr.vmem [resolvable:$true] %s2030
      %s2032 = sshll.u32 %s8, 4
      %s2033 = int_to_ptr.hbm [resolvable:$true] %s2032
      %2038 = dma.vmem_to_hbm [thread:$0]  %s2031, 1024, %s2033, [#allocation4], 128, 128, 8
    $region37: #{tpu_custom_call.1} parent=1 // pred_fallthru
      _
    // Predicated region
    $region38: #{tpu_custom_call.1} parent=1 // pred_check
      _
    $region39: #{tpu_custom_call.1} parent=1 // pred_check_branch
      %2040 = sbr.rel (0) target = $region41
    $region40: #{tpu_custom_call.1} parent=1 // pred_region
      %2042 = dma.done [#allocation4], 1024
    $region41: #{tpu_custom_call.1} parent=1 // pred_fallthru
      _
    %2043 = vsyncpa [#allocation4], 1

</llo_original>
